<compile_context>
chip_gen: v6e
topology: v6e:2x2x1
jax: 0.10.0
libtpu: 0.0.40
codegen_flags: <defaults>
</compile_context>

<pallas_src>
import functools

import jax
import jax.numpy as jnp
import numpy as np
from jax import lax
from jax.experimental import pallas as pl
from jax.experimental.pallas import tpu as pltpu


def _round_up(x, m):
    return ((x + m - 1) // m) * m


def _pick_tile(total, candidates=(512, 256, 128)):
    """Largest candidate tile that divides `total`; falls back to `total`."""
    for c in candidates:
        if total % c == 0:
            return c
    return total


# ----------------------------------------------------------------------------
# Pass 1: dequantize codes -> W^T (scales folded in), lane-dense on out dim.
# ----------------------------------------------------------------------------
def _dequant_kernel(codes_ref, cbT_ref, scale_ref, w_ref, *,
                    num_codebooks, codebook_size, in_group_size,
                    groups_per_step):
    NC, CBS, IGS, GPS = num_codebooks, codebook_size, in_group_size, groups_per_step
    L = NC * CBS
    OT = w_ref.shape[1]

    # Row index of the (L, OT) one-hot selector.
    row_id = lax.broadcasted_iota(jnp.int32, (L, OT), 0)

    parts = []
    for g in range(GPS):
        onehot = jnp.zeros((L, OT), jnp.float32)
        for c in range(NC):
            code_c = codes_ref[g, c:c + 1, :] + c * CBS          # (1, OT)
            onehot = onehot + (row_id == code_c).astype(jnp.float32)
        # (IGS, L) @ (L, OT) -> (IGS, OT): summed-over-codebooks weight slab,
        # lane-dense on the out-feature axis.
        parts.append(jnp.dot(cbT_ref[...], onehot,
                             preferred_element_type=jnp.float32))
    w = parts[0] if GPS == 1 else jnp.concatenate(parts, axis=0)  # (GPS*IGS, OT)
    # Fold scales once (padded out columns have scale 0 -> zero weights).
    w_ref[...] = (w * scale_ref[...]).astype(w_ref.dtype)


# ----------------------------------------------------------------------------
# Pass 2: plain tiled matmul  y = x @ W^T  (scales already folded into W^T).
# ----------------------------------------------------------------------------
def _matmul_kernel(x_ref, w_ref, o_ref, acc_ref):
    @pl.when(pl.program_id(2) == 0)
    def _():
        acc_ref[...] = jnp.zeros_like(acc_ref)

    acc_ref[...] += jnp.dot(x_ref[...], w_ref[...],
                            preferred_element_type=jnp.float32)

    @pl.when(pl.program_id(2) == pl.num_programs(2) - 1)
    def _():
        o_ref[...] = acc_ref[...].astype(o_ref.dtype)


def quantized_linear_forward(x, codes, codebooks, scales, *,
                             batch_tile=256, compute_dtype=jnp.bfloat16):
    """AQLM QuantizedLinear forward (no bias, out_group_size must be 1)."""
    NC, CBS, OGS, IGS = codebooks.shape
    NOG, NIG, NC2 = codes.shape
    assert NC2 == NC
    assert OGS == 1, "kernel supports out_group_size == 1 (standard AQLM)"
    in_features = NIG * IGS
    out_features = NOG * OGS
    L = NC * CBS
    MiB = 1024 * 1024

    # ---------------- parameter re-packing (lane-dense layouts) --------------
    NOG_P = _round_up(max(NOG, 128), 128)       # lane-dense / 128-multiple out dim
    # codes: reinterpret signed storage as unsigned code indices, put the long
    # (out-feature) axis on lanes:  (NOG, NIG, NC) -> (NIG, NC, NOG_P).
    codes_u = codes.astype(jnp.int32) & (CBS - 1)
    codes3d = jnp.pad(jnp.transpose(codes_u, (1, 2, 0)),
                      ((0, 0), (0, 0), (0, NOG_P - NOG)))
    # codebooks: (NC, CBS, 1, IGS) -> (IGS, NC*CBS), L=NC*CBS on lanes.
    cbT = jnp.transpose(codebooks.reshape(L, IGS).astype(jnp.float32))
    # scales folded into W; padded out columns get scale 0 -> zero weights.
    scale_row = jnp.pad(scales.reshape(1, NOG).astype(jnp.float32),
                        ((0, 0), (0, NOG_P - NOG)))

    # ---------------- pass 1: dequantization ---------------------------------
    OT = _pick_tile(NOG_P)
    # Groups per dequant step: make the W^T row-block a multiple of 32 sublanes
    # (safe for any operand dtype), else fall back to all groups (full dim).
    GPS = NIG
    for g in range(1, NIG + 1):
        if NIG % g == 0 and (g * IGS) % 32 == 0:
            GPS = g
            break
    ROWS = GPS * IGS
    w_itemsize = jnp.dtype(compute_dtype).itemsize

    dq_est = (2 * GPS * NC * OT * 4 + 2 * IGS * L * 4 + 2 * OT * 4
              + 2 * ROWS * OT * w_itemsize + 3 * L * OT * 4)
    dq_vmem = int(min(64 * MiB, max(32 * MiB, 2 * dq_est)))

    w_t = pl.pallas_call(
        functools.partial(_dequant_kernel, num_codebooks=NC, codebook_size=CBS,
                          in_group_size=IGS, groups_per_step=GPS),
        out_shape=jax.ShapeDtypeStruct((in_features, NOG_P), compute_dtype),
        grid_spec=pltpu.PrefetchScalarGridSpec(
            num_scalar_prefetch=0,
            grid=(NIG // GPS, NOG_P // OT),
            in_specs=[
                pl.BlockSpec((GPS, NC, OT), lambda i, j: (i, 0, j)),
                pl.BlockSpec((IGS, L), lambda i, j: (0, 0)),
                pl.BlockSpec((1, OT), lambda i, j: (0, j)),
            ],
            out_specs=pl.BlockSpec((ROWS, OT), lambda i, j: (i, j)),
        ),
        compiler_params=pltpu.CompilerParams(
            dimension_semantics=("parallel", "parallel"),
            vmem_limit_bytes=dq_vmem),
    )(codes3d, cbT, scale_row)

    # ---------------- pass 2: y = x @ W^T -------------------------------------
    lead = x.shape[:-1]
    xf = x.reshape(-1, in_features).astype(compute_dtype)
    B = xf.shape[0]
    batch_tile = _round_up(batch_tile, 32)
    TM = min(batch_tile, _round_up(B, 32))
    Bp = _round_up(B, TM)
    if Bp != B:
        xf = jnp.pad(xf, ((0, Bp - B), (0, 0)))
    TN = _pick_tile(NOG_P)
    TK = _pick_tile(in_features)

    mm_est = (2 * TM * TK * w_itemsize + 2 * TK * TN * w_itemsize
              + 2 * TM * TN * 4 + TM * TN * 4)
    mm_vmem = int(min(64 * MiB, max(32 * MiB, 2 * mm_est)))

    out = pl.pallas_call(
        _matmul_kernel,
        out_shape=jax.ShapeDtypeStruct((Bp, NOG_P), jnp.float32),
        grid_spec=pltpu.PrefetchScalarGridSpec(
            num_scalar_prefetch=0,
            grid=(Bp // TM, NOG_P // TN, in_features // TK),
            in_specs=[
                pl.BlockSpec((TM, TK), lambda i, j, k: (i, k)),
                pl.BlockSpec((TK, TN), lambda i, j, k: (k, j)),
            ],
            out_specs=pl.BlockSpec((TM, TN), lambda i, j, k: (i, j)),
            scratch_shapes=[pltpu.VMEM((TM, TN), jnp.float32)],
        ),
        compiler_params=pltpu.CompilerParams(
            dimension_semantics=("parallel", "parallel", "arbitrary"),
            vmem_limit_bytes=mm_vmem),
    )(xf, w_t)

    return out[:B, :out_features].reshape(*lead, out_features)


def reference_forward(x, codes, codebooks, scales):
    """Pure-JAX reference matching the numba path of QuantizedLinear.forward."""
    NC, CBS, OGS, IGS = codebooks.shape
    NOG, NIG, _ = codes.shape
    codes_u = codes.astype(jnp.int32) & (CBS - 1)           # unsigned reinterpretation
    w = codebooks[jnp.arange(NC)[None, None, :], codes_u]   # (NOG, NIG, NC, OGS, IGS)
    w = w.sum(axis=2)                                       # (NOG, NIG, OGS, IGS)
    w = w.transpose(0, 2, 1, 3).reshape(NOG * OGS, NIG * IGS)
    xf = x.reshape(-1, NIG * IGS).astype(jnp.float32)
    y = lax.dot_general(xf, w, (((1,), (1,)), ((), ())),
                        precision=lax.Precision.HIGHEST)
    y = y * scales.reshape(1, -1)                           # out_group_size == 1
    return y.reshape(x.shape[:-1] + (NOG * OGS,))


if __name__ == "__main__":
    # Module config (small, consistent with QuantizedLinear.__init__)
    in_features, out_features = 32, 32
    in_group_size, out_group_size = 8, 1
    num_codebooks, nbits_per_codebook = 2, 8
    codebook_size = 2 ** nbits_per_codebook
    num_out_groups = out_features // out_group_size
    num_in_groups = in_features // in_group_size

    key = jax.random.PRNGKey(0)
    k1, k2, k3, k4 = jax.random.split(key, 4)
    codebooks = jax.random.uniform(
        k1, (num_codebooks, codebook_size, out_group_size, in_group_size),
        dtype=jnp.float32) / 1e5
    # codes stored as signed int8 (as in real checkpoints): values wrap negative.
    codes = jax.random.randint(
        k2, (num_out_groups, num_in_groups, num_codebooks), 0, codebook_size,
        dtype=jnp.int32).astype(jnp.int8)
    scales = jax.random.uniform(
        k3, (num_out_groups, 1, 1, 1), dtype=jnp.float32, minval=0.5, maxval=1.5)

    x = jax.random.normal(k4, (2, 8, in_features), dtype=jnp.float32)

    y = quantized_linear_forward(x, codes, codebooks, scales)
    y = jax.block_until_ready(y)

    y_ref = reference_forward(x, codes, codebooks, scales)
    assert y.shape == x.shape[:-1] + (out_features,)
    assert y.dtype == jnp.float32
    np.testing.assert_allclose(np.asarray(y), np.asarray(y_ref),
                               rtol=2e-2, atol=2e-6)
    print("KERNEL_OK")
</pallas_src>

<mosaic_0001>
module attributes {stable_mosaic.version = 11 : i64} {
  func.func @_dequant_kernel(%arg0: i32, %arg1: i32, %arg2: memref<4x2x128xi32, #tpu.memory_space<vmem>>, %arg3: memref<8x512xf32, #tpu.memory_space<vmem>>, %arg4: memref<1x128xf32, #tpu.memory_space<vmem>>, %arg5: memref<32x128xbf16, #tpu.memory_space<vmem>>) attributes {dimension_semantics = [#tpu.dimension_semantics<parallel>, #tpu.dimension_semantics<parallel>], iteration_bounds = array<i64: 1, 1>, scalar_prefetch = 0 : i64, scratch_operands = 0 : i64, tpu.core_type = #tpu.core_type<tc>, window_params = [{transform_indices = @transform_0, window_bounds = array<i64: 4, 2, 128>}, {pipeline_mode = #tpu.pipeline_mode<synchronous>, transform_indices = @transform_1, window_bounds = array<i64: 8, 512>}, {transform_indices = @transform_2, window_bounds = array<i64: 1, 128>}, {transform_indices = @transform_3, window_bounds = array<i64: 32, 128>}]} {
    %0 = tpu.iota {dimensions = array<i32: 0>} : vector<512x128xi32>
    %cst = arith.constant 0.000000e+00 : f32
    %1 = vector.broadcast %cst : f32 to vector<512x128xf32>
    %c0 = arith.constant 0 : index
    %c0_0 = arith.constant 0 : index
    %c0_1 = arith.constant 0 : index
    %2 = vector.load %arg2[%c0, %c0_0, %c0_1] : memref<4x2x128xi32, #tpu.memory_space<vmem>>, vector<1x1x128xi32>
    %3 = vector.shape_cast %2 : vector<1x1x128xi32> to vector<1x128xi32>
    %c0_i32 = arith.constant 0 : i32
    %4 = vector.broadcast %c0_i32 : i32 to vector<1x128xi32>
    %5 = arith.addi %3, %4 : vector<1x128xi32>
    %6 = vector.broadcast %5 : vector<1x128xi32> to vector<512x128xi32>
    %7 = arith.cmpi eq, %0, %6 : vector<512x128xi32>
    %8 = arith.extui %7 : vector<512x128xi1> to vector<512x128xi32>
    %9 = arith.sitofp %8 : vector<512x128xi32> to vector<512x128xf32>
    %10 = arith.addf %1, %9 : vector<512x128xf32>
    %c0_2 = arith.constant 0 : index
    %c1 = arith.constant 1 : index
    %c0_3 = arith.constant 0 : index
    %11 = vector.load %arg2[%c0_2, %c1, %c0_3] : memref<4x2x128xi32, #tpu.memory_space<vmem>>, vector<1x1x128xi32>
    %12 = vector.shape_cast %11 : vector<1x1x128xi32> to vector<1x128xi32>
    %c256_i32 = arith.constant 256 : i32
    %13 = vector.broadcast %c256_i32 : i32 to vector<1x128xi32>
    %14 = arith.addi %12, %13 : vector<1x128xi32>
    %15 = vector.broadcast %14 : vector<1x128xi32> to vector<512x128xi32>
    %16 = arith.cmpi eq, %0, %15 : vector<512x128xi32>
    %17 = arith.extui %16 : vector<512x128xi1> to vector<512x128xi32>
    %18 = arith.sitofp %17 : vector<512x128xi32> to vector<512x128xf32>
    %19 = arith.addf %10, %18 : vector<512x128xf32>
    %c0_4 = arith.constant 0 : index
    %c0_5 = arith.constant 0 : index
    %20 = vector.load %arg3[%c0_4, %c0_5] : memref<8x512xf32, #tpu.memory_space<vmem>>, vector<8x512xf32>
    %cst_6 = arith.constant dense<0.000000e+00> : vector<8x128xf32>
    %21 = tpu.matmul %20, %19, %cst_6 {dimension_numbers = #tpu.dot_dimension_numbers<[1], [0], [0], [1], [0, 0, 1, 1], [], []>} : vector<8x512xf32>, vector<512x128xf32>, vector<8x128xf32> -> vector<8x128xf32>
    %cst_7 = arith.constant 0.000000e+00 : f32
    %22 = vector.broadcast %cst_7 : f32 to vector<512x128xf32>
    %c1_8 = arith.constant 1 : index
    %c0_9 = arith.constant 0 : index
    %c0_10 = arith.constant 0 : index
    %23 = vector.load %arg2[%c1_8, %c0_9, %c0_10] : memref<4x2x128xi32, #tpu.memory_space<vmem>>, vector<1x1x128xi32>
    %24 = vector.shape_cast %23 : vector<1x1x128xi32> to vector<1x128xi32>
    %c0_i32_11 = arith.constant 0 : i32
    %25 = vector.broadcast %c0_i32_11 : i32 to vector<1x128xi32>
    %26 = arith.addi %24, %25 : vector<1x128xi32>
    %27 = vector.broadcast %26 : vector<1x128xi32> to vector<512x128xi32>
    %28 = arith.cmpi eq, %0, %27 : vector<512x128xi32>
    %29 = arith.extui %28 : vector<512x128xi1> to vector<512x128xi32>
    %30 = arith.sitofp %29 : vector<512x128xi32> to vector<512x128xf32>
    %31 = arith.addf %22, %30 : vector<512x128xf32>
    %c1_12 = arith.constant 1 : index
    %c1_13 = arith.constant 1 : index
    %c0_14 = arith.constant 0 : index
    %32 = vector.load %arg2[%c1_12, %c1_13, %c0_14] : memref<4x2x128xi32, #tpu.memory_space<vmem>>, vector<1x1x128xi32>
    %33 = vector.shape_cast %32 : vector<1x1x128xi32> to vector<1x128xi32>
    %c256_i32_15 = arith.constant 256 : i32
    %34 = vector.broadcast %c256_i32_15 : i32 to vector<1x128xi32>
    %35 = arith.addi %33, %34 : vector<1x128xi32>
    %36 = vector.broadcast %35 : vector<1x128xi32> to vector<512x128xi32>
    %37 = arith.cmpi eq, %0, %36 : vector<512x128xi32>
    %38 = arith.extui %37 : vector<512x128xi1> to vector<512x128xi32>
    %39 = arith.sitofp %38 : vector<512x128xi32> to vector<512x128xf32>
    %40 = arith.addf %31, %39 : vector<512x128xf32>
    %c0_16 = arith.constant 0 : index
    %c0_17 = arith.constant 0 : index
    %41 = vector.load %arg3[%c0_16, %c0_17] : memref<8x512xf32, #tpu.memory_space<vmem>>, vector<8x512xf32>
    %cst_18 = arith.constant dense<0.000000e+00> : vector<8x128xf32>
    %42 = tpu.matmul %41, %40, %cst_18 {dimension_numbers = #tpu.dot_dimension_numbers<[1], [0], [0], [1], [0, 0, 1, 1], [], []>} : vector<8x512xf32>, vector<512x128xf32>, vector<8x128xf32> -> vector<8x128xf32>
    %cst_19 = arith.constant 0.000000e+00 : f32
    %43 = vector.broadcast %cst_19 : f32 to vector<512x128xf32>
    %c2 = arith.constant 2 : index
    %c0_20 = arith.constant 0 : index
    %c0_21 = arith.constant 0 : index
    %44 = vector.load %arg2[%c2, %c0_20, %c0_21] : memref<4x2x128xi32, #tpu.memory_space<vmem>>, vector<1x1x128xi32>
    %45 = vector.shape_cast %44 : vector<1x1x128xi32> to vector<1x128xi32>
    %c0_i32_22 = arith.constant 0 : i32
    %46 = vector.broadcast %c0_i32_22 : i32 to vector<1x128xi32>
    %47 = arith.addi %45, %46 : vector<1x128xi32>
    %48 = vector.broadcast %47 : vector<1x128xi32> to vector<512x128xi32>
    %49 = arith.cmpi eq, %0, %48 : vector<512x128xi32>
    %50 = arith.extui %49 : vector<512x128xi1> to vector<512x128xi32>
    %51 = arith.sitofp %50 : vector<512x128xi32> to vector<512x128xf32>
    %52 = arith.addf %43, %51 : vector<512x128xf32>
    %c2_23 = arith.constant 2 : index
    %c1_24 = arith.constant 1 : index
    %c0_25 = arith.constant 0 : index
    %53 = vector.load %arg2[%c2_23, %c1_24, %c0_25] : memref<4x2x128xi32, #tpu.memory_space<vmem>>, vector<1x1x128xi32>
    %54 = vector.shape_cast %53 : vector<1x1x128xi32> to vector<1x128xi32>
    %c256_i32_26 = arith.constant 256 : i32
    %55 = vector.broadcast %c256_i32_26 : i32 to vector<1x128xi32>
    %56 = arith.addi %54, %55 : vector<1x128xi32>
    %57 = vector.broadcast %56 : vector<1x128xi32> to vector<512x128xi32>
    %58 = arith.cmpi eq, %0, %57 : vector<512x128xi32>
    %59 = arith.extui %58 : vector<512x128xi1> to vector<512x128xi32>
    %60 = arith.sitofp %59 : vector<512x128xi32> to vector<512x128xf32>
    %61 = arith.addf %52, %60 : vector<512x128xf32>
    %c0_27 = arith.constant 0 : index
    %c0_28 = arith.constant 0 : index
    %62 = vector.load %arg3[%c0_27, %c0_28] : memref<8x512xf32, #tpu.memory_space<vmem>>, vector<8x512xf32>
    %cst_29 = arith.constant dense<0.000000e+00> : vector<8x128xf32>
    %63 = tpu.matmul %62, %61, %cst_29 {dimension_numbers = #tpu.dot_dimension_numbers<[1], [0], [0], [1], [0, 0, 1, 1], [], []>} : vector<8x512xf32>, vector<512x128xf32>, vector<8x128xf32> -> vector<8x128xf32>
    %cst_30 = arith.constant 0.000000e+00 : f32
    %64 = vector.broadcast %cst_30 : f32 to vector<512x128xf32>
    %c3 = arith.constant 3 : index
    %c0_31 = arith.constant 0 : index
    %c0_32 = arith.constant 0 : index
    %65 = vector.load %arg2[%c3, %c0_31, %c0_32] : memref<4x2x128xi32, #tpu.memory_space<vmem>>, vector<1x1x128xi32>
    %66 = vector.shape_cast %65 : vector<1x1x128xi32> to vector<1x128xi32>
    %c0_i32_33 = arith.constant 0 : i32
    %67 = vector.broadcast %c0_i32_33 : i32 to vector<1x128xi32>
    %68 = arith.addi %66, %67 : vector<1x128xi32>
    %69 = vector.broadcast %68 : vector<1x128xi32> to vector<512x128xi32>
    %70 = arith.cmpi eq, %0, %69 : vector<512x128xi32>
    %71 = arith.extui %70 : vector<512x128xi1> to vector<512x128xi32>
    %72 = arith.sitofp %71 : vector<512x128xi32> to vector<512x128xf32>
    %73 = arith.addf %64, %72 : vector<512x128xf32>
    %c3_34 = arith.constant 3 : index
    %c1_35 = arith.constant 1 : index
    %c0_36 = arith.constant 0 : index
    %74 = vector.load %arg2[%c3_34, %c1_35, %c0_36] : memref<4x2x128xi32, #tpu.memory_space<vmem>>, vector<1x1x128xi32>
    %75 = vector.shape_cast %74 : vector<1x1x128xi32> to vector<1x128xi32>
    %c256_i32_37 = arith.constant 256 : i32
    %76 = vector.broadcast %c256_i32_37 : i32 to vector<1x128xi32>
    %77 = arith.addi %75, %76 : vector<1x128xi32>
    %78 = vector.broadcast %77 : vector<1x128xi32> to vector<512x128xi32>
    %79 = arith.cmpi eq, %0, %78 : vector<512x128xi32>
    %80 = arith.extui %79 : vector<512x128xi1> to vector<512x128xi32>
    %81 = arith.sitofp %80 : vector<512x128xi32> to vector<512x128xf32>
    %82 = arith.addf %73, %81 : vector<512x128xf32>
    %c0_38 = arith.constant 0 : index
    %c0_39 = arith.constant 0 : index
    %83 = vector.load %arg3[%c0_38, %c0_39] : memref<8x512xf32, #tpu.memory_space<vmem>>, vector<8x512xf32>
    %cst_40 = arith.constant dense<0.000000e+00> : vector<8x128xf32>
    %84 = tpu.matmul %83, %82, %cst_40 {dimension_numbers = #tpu.dot_dimension_numbers<[1], [0], [0], [1], [0, 0, 1, 1], [], []>} : vector<8x512xf32>, vector<512x128xf32>, vector<8x128xf32> -> vector<8x128xf32>
    %85 = tpu.concatenate %21, %42, %63, %84 in 0 : vector<8x128xf32>, vector<8x128xf32>, vector<8x128xf32>, vector<8x128xf32> -> vector<32x128xf32>
    %c0_41 = arith.constant 0 : index
    %c0_42 = arith.constant 0 : index
    %86 = vector.load %arg4[%c0_41, %c0_42] : memref<1x128xf32, #tpu.memory_space<vmem>>, vector<1x128xf32>
    %87 = vector.broadcast %86 : vector<1x128xf32> to vector<32x128xf32>
    %88 = arith.mulf %85, %87 : vector<32x128xf32>
    %89 = arith.truncf %88 : vector<32x128xf32> to vector<32x128xbf16>
    %c0_43 = arith.constant 0 : index
    %c0_44 = arith.constant 0 : index
    %90 = vector.load %arg5[%c0_43, %c0_44] : memref<32x128xbf16, #tpu.memory_space<vmem>>, vector<32x128xbf16>
    tpu.vector_store %arg5[%c0_43, %c0_44], %89 {strides = array<i32>} : memref<32x128xbf16, #tpu.memory_space<vmem>>, vector<32x128xbf16>,
    return
  }
  func.func @transform_0(%arg0: i32, %arg1: i32) -> (i32, i32, i32) {
    %c0_i32 = arith.constant 0 : i32
    %c0_i32_0 = arith.constant 0 : i32
    return %arg0, %c0_i32, %arg1 : i32, i32, i32
  }
  func.func @transform_1(%arg0: i32, %arg1: i32) -> (i32, i32) {
    %c0_i32 = arith.constant 0 : i32
    %c0_i32_0 = arith.constant 0 : i32
    %c0_i32_1 = arith.constant 0 : i32
    return %c0_i32, %c0_i32_0 : i32, i32
  }
  func.func @transform_2(%arg0: i32, %arg1: i32) -> (i32, i32) {
    %c0_i32 = arith.constant 0 : i32
    %c0_i32_0 = arith.constant 0 : i32
    return %c0_i32, %arg1 : i32, i32
  }
  func.func @transform_3(%arg0: i32, %arg1: i32) -> (i32, i32) {
    %c0_i32 = arith.constant 0 : i32
    return %arg0, %arg1 : i32, i32
  }
}

</mosaic_0001>

<llo_original>
// kernel: tpu_custom_call.1
$region0: #{tpu_custom_call.1}
  #allocation0 [shape = 'u32[]', space=smem, size = 0x4, offset = 0x4, fixed_abs, tag = 'smem constant byte address 0x4 - core index']
  #allocation1 [shape = 'u32[144,128]{1,0:T(1,128)}', space=vmem, size = 0x12000, scoped, tag = 'internal scratch']
  %s0 = inlined_call_operand.hbm [shape: s32[4,2,128], index: 0, kind: input, shape index: {}]
  %s1 = inlined_call_operand.hbm [shape: f32[8,512], index: 1, kind: input, shape index: {}]
  %s2 = inlined_call_operand.vmem [shape: f32[1,128], index: 2, kind: input, shape index: {}]
  %s3 = inlined_call_operand.hbm [shape: bf16[32,128], index: 3, kind: output, shape index: {}]
  %s4 = sld [smem:[#allocation0]]
  $region30: #{tpu_custom_call.1} parent=0
    _
  %s6 = ssub.s32 1, %s4
  %s7 = scalar_select 0, %s6, %s4
  $region1: #{tpu_custom_call.1} parent=0
    #allocation2 [shape = 'u8[4096]{0}', space=vmem, size = 0x1000, scoped, tag = 'input window, operand 0, single buffered']
    #allocation3 [shape = 's32[1]{0}', space=sflag, size = 0x4, scoped, tag = 'scoped memory for tpu_custom_call.1']
    #allocation4 [shape = 's32[1]{0}', space=sflag, size = 0x4, scoped, tag = 'scoped memory for tpu_custom_call.1']
    #allocation5 [shape = 'u8[16384]{0}', space=vmem, size = 0x4000, scoped, tag = 'input window, operand 1, single buffered']
    #allocation6 [shape = 's32[1]{0}', space=sflag, size = 0x4, scoped, tag = 'scoped memory for tpu_custom_call.1']
    #allocation7 [shape = 'u8[8192]{0}', space=vmem, size = 0x2000, scoped, tag = 'output window, operand 0, single buffered']
    %8 = vsyncpa [#allocation3], 0
    %9 = vsyncpa [#allocation6], 0
    %10 = vsyncpa [#allocation4], 0
    // Predicated region
    $region2: #{tpu_custom_call.1} parent=1 // pred_check
      _
    $region3: #{tpu_custom_call.1} parent=1 // pred_check_branch
      %12 = sbr.rel (0) target = $region5
    $region4: #{tpu_custom_call.1} parent=1 // pred_region
      %s14 = ssub.s32 128, 128
      %15 = vsyncadd [#allocation3], %s14
      %s16 = sshll.u32 [#allocation2], 4
      %s17 = int_to_ptr.vmem [resolvable:$true] %s16
      %22 = dma.hbm_to_vmem [thread:$0]  %s0, 128, %s17, [#allocation3], 32, 32, 2
    $region5: #{tpu_custom_call.1} parent=1 // pred_fallthru
      _
    // Predicated region
    $region6: #{tpu_custom_call.1} parent=1 // pred_check
      _
    $region7: #{tpu_custom_call.1} parent=1 // pred_check_branch
      %24 = sbr.rel (0) target = $region9
    $region8: #{tpu_custom_call.1} parent=1 // pred_region
      %s26 = ssub.s32 512, 512
      %27 = vsyncadd [#allocation6], %s26
      %s29 = sshll.u32 [#allocation5], 4
      %s30 = int_to_ptr.vmem [resolvable:$true] %s29
      %32 = dma.hbm_to_vmem [thread:$0]  %s1, 512, %s30, [#allocation6]
    $region9: #{tpu_custom_call.1} parent=1 // pred_fallthru
      _
    // Predicated region
    $region10: #{tpu_custom_call.1} parent=1 // pred_check
      _
    $region11: #{tpu_custom_call.1} parent=1 // pred_check_branch
      %34 = sbr.rel (0) target = $region13
    $region12: #{tpu_custom_call.1} parent=1 // pred_region
      _
    $region13: #{tpu_custom_call.1} parent=1 // pred_fallthru
      _
    // Predicated region
    $region14: #{tpu_custom_call.1} parent=1 // pred_check
      _
    $region15: #{tpu_custom_call.1} parent=1 // pred_check_branch
      %36 = sbr.rel (0) target = $region17
    $region16: #{tpu_custom_call.1} parent=1 // pred_region
      %37 = dma.done [#allocation3], 128
    $region17: #{tpu_custom_call.1} parent=1 // pred_fallthru
      _
    // Predicated region
    $region18: #{tpu_custom_call.1} parent=1 // pred_check
      _
    $region19: #{tpu_custom_call.1} parent=1 // pred_check_branch
      %39 = sbr.rel (0) target = $region21
    $region20: #{tpu_custom_call.1} parent=1 // pred_region
      %40 = dma.done [#allocation6], 512
    $region21: #{tpu_custom_call.1} parent=1 // pred_fallthru
      _
    %v41 = vlaneseq
    %v42 = vshrl.u32 %v41, 7
    %v43 = vadd.s32 %v42, 8
    %v44 = vadd.s32 %v42, 16
    %v45 = vadd.s32 %v42, 24
    %v46 = vadd.s32 %v42, 32
    %v47 = vadd.s32 %v42, 40
    %v48 = vadd.s32 %v42, 48
    %v49 = vadd.s32 %v42, 56
    %v50 = vadd.s32 %v42, 64
    %v51 = vadd.s32 %v42, 72
    %v52 = vadd.s32 %v42, 80
    %v53 = vadd.s32 %v42, 88
    %v54 = vadd.s32 %v42, 96
    %v55 = vadd.s32 %v42, 104
    %v56 = vadd.s32 %v42, 112
    %v57 = vadd.s32 %v42, 120
    %v58 = vadd.s32 %v42, 128
    %v59 = vadd.s32 %v42, 136
    %v60 = vadd.s32 %v42, 144
    %v61 = vadd.s32 %v42, 152
    %v62 = vadd.s32 %v42, 160
    %v63 = vadd.s32 %v42, 168
    %v64 = vadd.s32 %v42, 176
    %v65 = vadd.s32 %v42, 184
    %v66 = vadd.s32 %v42, 192
    %v67 = vadd.s32 %v42, 200
    %v68 = vadd.s32 %v42, 208
    %v69 = vadd.s32 %v42, 216
    %v70 = vadd.s32 %v42, 224
    %v71 = vadd.s32 %v42, 232
    %v72 = vadd.s32 %v42, 240
    %v73 = vadd.s32 %v42, 248
    %v74 = vadd.s32 %v42, 256
    %v75 = vadd.s32 %v42, 264
    %v76 = vadd.s32 %v42, 272
    %v77 = vadd.s32 %v42, 280
    %v78 = vadd.s32 %v42, 288
    %v79 = vadd.s32 %v42, 296
    %v80 = vadd.s32 %v42, 304
    %v81 = vadd.s32 %v42, 312
    %v82 = vadd.s32 %v42, 320
    %v83 = vadd.s32 %v42, 328
    %v84 = vadd.s32 %v42, 336
    %v85 = vadd.s32 %v42, 344
    %v86 = vadd.s32 %v42, 352
    %v87 = vadd.s32 %v42, 360
    %v88 = vadd.s32 %v42, 368
    %v89 = vadd.s32 %v42, 376
    %v90 = vadd.s32 %v42, 384
    %v91 = vadd.s32 %v42, 392
    %v92 = vadd.s32 %v42, 400
    %v93 = vadd.s32 %v42, 408
    %v94 = vadd.s32 %v42, 416
    %v95 = vadd.s32 %v42, 424
    %v96 = vadd.s32 %v42, 432
    %v97 = vadd.s32 %v42, 440
    %v98 = vadd.s32 %v42, 448
    %v99 = vadd.s32 %v42, 456
    %v100 = vadd.s32 %v42, 464
    %v101 = vadd.s32 %v42, 472
    %v102 = vadd.s32 %v42, 480
    %v103 = vadd.s32 %v42, 488
    %v104 = vadd.s32 %v42, 496
    %v105 = vadd.s32 %v42, 504
    %v106 = vld [vmem:[#allocation2] sm:$0x1]
    %v107 = vlaneseq
    %v108 = vshrl.u32 %v107, 7
    %v109 = vsub.s32 0, %v108
    %v110 = vrot.slane %v106, %v109
    %vm111 = vcmp.eq.s32.totalorder %v42, %v110
    %vm112 = vcmp.eq.s32.totalorder %v43, %v110
    %vm113 = vcmp.eq.s32.totalorder %v44, %v110
    %vm114 = vcmp.eq.s32.totalorder %v45, %v110
    %vm115 = vcmp.eq.s32.totalorder %v46, %v110
    %vm116 = vcmp.eq.s32.totalorder %v47, %v110
    %vm117 = vcmp.eq.s32.totalorder %v48, %v110
    %vm118 = vcmp.eq.s32.totalorder %v49, %v110
    %vm119 = vcmp.eq.s32.totalorder %v50, %v110
    %vm120 = vcmp.eq.s32.totalorder %v51, %v110
    %vm121 = vcmp.eq.s32.totalorder %v52, %v110
    %vm122 = vcmp.eq.s32.totalorder %v53, %v110
    %vm123 = vcmp.eq.s32.totalorder %v54, %v110
    %vm124 = vcmp.eq.s32.totalorder %v55, %v110
    %vm125 = vcmp.eq.s32.totalorder %v56, %v110
    %vm126 = vcmp.eq.s32.totalorder %v57, %v110
    %vm127 = vcmp.eq.s32.totalorder %v58, %v110
    %vm128 = vcmp.eq.s32.totalorder %v59, %v110
    %vm129 = vcmp.eq.s32.totalorder %v60, %v110
    %vm130 = vcmp.eq.s32.totalorder %v61, %v110
    %vm131 = vcmp.eq.s32.totalorder %v62, %v110
    %vm132 = vcmp.eq.s32.totalorder %v63, %v110
    %vm133 = vcmp.eq.s32.totalorder %v64, %v110
    %vm134 = vcmp.eq.s32.totalorder %v65, %v110
    %vm135 = vcmp.eq.s32.totalorder %v66, %v110
    %vm136 = vcmp.eq.s32.totalorder %v67, %v110
    %vm137 = vcmp.eq.s32.totalorder %v68, %v110
    %vm138 = vcmp.eq.s32.totalorder %v69, %v110
    %vm139 = vcmp.eq.s32.totalorder %v70, %v110
    %vm140 = vcmp.eq.s32.totalorder %v71, %v110
    %vm141 = vcmp.eq.s32.totalorder %v72, %v110
    %vm142 = vcmp.eq.s32.totalorder %v73, %v110
    %vm143 = vcmp.eq.s32.totalorder %v74, %v110
    %vm144 = vcmp.eq.s32.totalorder %v75, %v110
    %vm145 = vcmp.eq.s32.totalorder %v76, %v110
    %vm146 = vcmp.eq.s32.totalorder %v77, %v110
    %vm147 = vcmp.eq.s32.totalorder %v78, %v110
    %vm148 = vcmp.eq.s32.totalorder %v79, %v110
    %vm149 = vcmp.eq.s32.totalorder %v80, %v110
    %vm150 = vcmp.eq.s32.totalorder %v81, %v110
    %vm151 = vcmp.eq.s32.totalorder %v82, %v110
    %vm152 = vcmp.eq.s32.totalorder %v83, %v110
    %vm153 = vcmp.eq.s32.totalorder %v84, %v110
    %vm154 = vcmp.eq.s32.totalorder %v85, %v110
    %vm155 = vcmp.eq.s32.totalorder %v86, %v110
    %vm156 = vcmp.eq.s32.totalorder %v87, %v110
    %vm157 = vcmp.eq.s32.totalorder %v88, %v110
    %vm158 = vcmp.eq.s32.totalorder %v89, %v110
    %vm159 = vcmp.eq.s32.totalorder %v90, %v110
    %vm160 = vcmp.eq.s32.totalorder %v91, %v110
    %vm161 = vcmp.eq.s32.totalorder %v92, %v110
    %vm162 = vcmp.eq.s32.totalorder %v93, %v110
    %vm163 = vcmp.eq.s32.totalorder %v94, %v110
    %vm164 = vcmp.eq.s32.totalorder %v95, %v110
    %vm165 = vcmp.eq.s32.totalorder %v96, %v110
    %vm166 = vcmp.eq.s32.totalorder %v97, %v110
    %vm167 = vcmp.eq.s32.totalorder %v98, %v110
    %vm168 = vcmp.eq.s32.totalorder %v99, %v110
    %vm169 = vcmp.eq.s32.totalorder %v100, %v110
    %vm170 = vcmp.eq.s32.totalorder %v101, %v110
    %vm171 = vcmp.eq.s32.totalorder %v102, %v110
    %vm172 = vcmp.eq.s32.totalorder %v103, %v110
    %vm173 = vcmp.eq.s32.totalorder %v104, %v110
    %vm174 = vcmp.eq.s32.totalorder %v105, %v110
    %v175 = vsel %vm111, 1, 0
    %v176 = vsel %vm112, 1, 0
    %v177 = vsel %vm113, 1, 0
    %v178 = vsel %vm114, 1, 0
    %v179 = vsel %vm115, 1, 0
    %v180 = vsel %vm116, 1, 0
    %v181 = vsel %vm117, 1, 0
    %v182 = vsel %vm118, 1, 0
    %v183 = vsel %vm119, 1, 0
    %v184 = vsel %vm120, 1, 0
    %v185 = vsel %vm121, 1, 0
    %v186 = vsel %vm122, 1, 0
    %v187 = vsel %vm123, 1, 0
    %v188 = vsel %vm124, 1, 0
    %v189 = vsel %vm125, 1, 0
    %v190 = vsel %vm126, 1, 0
    %v191 = vsel %vm127, 1, 0
    %v192 = vsel %vm128, 1, 0
    %v193 = vsel %vm129, 1, 0
    %v194 = vsel %vm130, 1, 0
    %v195 = vsel %vm131, 1, 0
    %v196 = vsel %vm132, 1, 0
    %v197 = vsel %vm133, 1, 0
    %v198 = vsel %vm134, 1, 0
    %v199 = vsel %vm135, 1, 0
    %v200 = vsel %vm136, 1, 0
    %v201 = vsel %vm137, 1, 0
    %v202 = vsel %vm138, 1, 0
    %v203 = vsel %vm139, 1, 0
    %v204 = vsel %vm140, 1, 0
    %v205 = vsel %vm141, 1, 0
    %v206 = vsel %vm142, 1, 0
    %v207 = vsel %vm143, 1, 0
    %v208 = vsel %vm144, 1, 0
    %v209 = vsel %vm145, 1, 0
    %v210 = vsel %vm146, 1, 0
    %v211 = vsel %vm147, 1, 0
    %v212 = vsel %vm148, 1, 0
    %v213 = vsel %vm149, 1, 0
    %v214 = vsel %vm150, 1, 0
    %v215 = vsel %vm151, 1, 0
    %v216 = vsel %vm152, 1, 0
    %v217 = vsel %vm153, 1, 0
    %v218 = vsel %vm154, 1, 0
    %v219 = vsel %vm155, 1, 0
    %v220 = vsel %vm156, 1, 0
    %v221 = vsel %vm157, 1, 0
    %v222 = vsel %vm158, 1, 0
    %v223 = vsel %vm159, 1, 0
    %v224 = vsel %vm160, 1, 0
    %v225 = vsel %vm161, 1, 0
    %v226 = vsel %vm162, 1, 0
    %v227 = vsel %vm163, 1, 0
    %v228 = vsel %vm164, 1, 0
    %v229 = vsel %vm165, 1, 0
    %v230 = vsel %vm166, 1, 0
    %v231 = vsel %vm167, 1, 0
    %v232 = vsel %vm168, 1, 0
    %v233 = vsel %vm169, 1, 0
    %v234 = vsel %vm170, 1, 0
    %v235 = vsel %vm171, 1, 0
    %v236 = vsel %vm172, 1, 0
    %v237 = vsel %vm173, 1, 0
    %v238 = vsel %vm174, 1, 0
    %v239 = vcvt.s32.f32 %v175
    %v240 = vcvt.s32.f32 %v176
    %v241 = vcvt.s32.f32 %v177
    %v242 = vcvt.s32.f32 %v178
    %v243 = vcvt.s32.f32 %v179
    %v244 = vcvt.s32.f32 %v180
    %v245 = vcvt.s32.f32 %v181
    %v246 = vcvt.s32.f32 %v182
    %v247 = vcvt.s32.f32 %v183
    %v248 = vcvt.s32.f32 %v184
    %v249 = vcvt.s32.f32 %v185
    %v250 = vcvt.s32.f32 %v186
    %v251 = vcvt.s32.f32 %v187
    %v252 = vcvt.s32.f32 %v188
    %v253 = vcvt.s32.f32 %v189
    %v254 = vcvt.s32.f32 %v190
    %v255 = vcvt.s32.f32 %v191
    %v256 = vcvt.s32.f32 %v192
    %v257 = vcvt.s32.f32 %v193
    %v258 = vcvt.s32.f32 %v194
    %v259 = vcvt.s32.f32 %v195
    %v260 = vcvt.s32.f32 %v196
    %v261 = vcvt.s32.f32 %v197
    %v262 = vcvt.s32.f32 %v198
    %v263 = vcvt.s32.f32 %v199
    %v264 = vcvt.s32.f32 %v200
    %v265 = vcvt.s32.f32 %v201
    %v266 = vcvt.s32.f32 %v202
    %v267 = vcvt.s32.f32 %v203
    %v268 = vcvt.s32.f32 %v204
    %v269 = vcvt.s32.f32 %v205
    %v270 = vcvt.s32.f32 %v206
    %v271 = vcvt.s32.f32 %v207
    %v272 = vcvt.s32.f32 %v208
    %v273 = vcvt.s32.f32 %v209
    %v274 = vcvt.s32.f32 %v210
    %v275 = vcvt.s32.f32 %v211
    %v276 = vcvt.s32.f32 %v212
    %v277 = vcvt.s32.f32 %v213
    %v278 = vcvt.s32.f32 %v214
    %v279 = vcvt.s32.f32 %v215
    %v280 = vcvt.s32.f32 %v216
    %v281 = vcvt.s32.f32 %v217
    %v282 = vcvt.s32.f32 %v218
    %v283 = vcvt.s32.f32 %v219
    %v284 = vcvt.s32.f32 %v220
    %v285 = vcvt.s32.f32 %v221
    %v286 = vcvt.s32.f32 %v222
    %v287 = vcvt.s32.f32 %v223
    %v288 = vcvt.s32.f32 %v224
    %v289 = vcvt.s32.f32 %v225
    %v290 = vcvt.s32.f32 %v226
    %v291 = vcvt.s32.f32 %v227
    %v292 = vcvt.s32.f32 %v228
    %v293 = vcvt.s32.f32 %v229
    %v294 = vcvt.s32.f32 %v230
    %v295 = vcvt.s32.f32 %v231
    %v296 = vcvt.s32.f32 %v232
    %v297 = vcvt.s32.f32 %v233
    %v298 = vcvt.s32.f32 %v234
    %v299 = vcvt.s32.f32 %v235
    %v300 = vcvt.s32.f32 %v236
    %v301 = vcvt.s32.f32 %v237
    %v302 = vcvt.s32.f32 %v238
    %v303 = vadd.f32 %v239, 0.0
    %v304 = vadd.f32 %v240, 0.0
    %v305 = vadd.f32 %v241, 0.0
    %v306 = vadd.f32 %v242, 0.0
    %v307 = vadd.f32 %v243, 0.0
    %v308 = vadd.f32 %v244, 0.0
    %v309 = vadd.f32 %v245, 0.0
    %v310 = vadd.f32 %v246, 0.0
    %v311 = vadd.f32 %v247, 0.0
    %v312 = vadd.f32 %v248, 0.0
    %v313 = vadd.f32 %v249, 0.0
    %v314 = vadd.f32 %v250, 0.0
    %v315 = vadd.f32 %v251, 0.0
    %v316 = vadd.f32 %v252, 0.0
    %v317 = vadd.f32 %v253, 0.0
    %v318 = vadd.f32 %v254, 0.0
    %v319 = vadd.f32 %v255, 0.0
    %v320 = vadd.f32 %v256, 0.0
    %v321 = vadd.f32 %v257, 0.0
    %v322 = vadd.f32 %v258, 0.0
    %v323 = vadd.f32 %v259, 0.0
    %v324 = vadd.f32 %v260, 0.0
    %v325 = vadd.f32 %v261, 0.0
    %v326 = vadd.f32 %v262, 0.0
    %v327 = vadd.f32 %v263, 0.0
    %v328 = vadd.f32 %v264, 0.0
    %v329 = vadd.f32 %v265, 0.0
    %v330 = vadd.f32 %v266, 0.0
    %v331 = vadd.f32 %v267, 0.0
    %v332 = vadd.f32 %v268, 0.0
    %v333 = vadd.f32 %v269, 0.0
    %v334 = vadd.f32 %v270, 0.0
    %v335 = vadd.f32 %v271, 0.0
    %v336 = vadd.f32 %v272, 0.0
    %v337 = vadd.f32 %v273, 0.0
    %v338 = vadd.f32 %v274, 0.0
    %v339 = vadd.f32 %v275, 0.0
    %v340 = vadd.f32 %v276, 0.0
    %v341 = vadd.f32 %v277, 0.0
    %v342 = vadd.f32 %v278, 0.0
    %v343 = vadd.f32 %v279, 0.0
    %v344 = vadd.f32 %v280, 0.0
    %v345 = vadd.f32 %v281, 0.0
    %v346 = vadd.f32 %v282, 0.0
    %v347 = vadd.f32 %v283, 0.0
    %v348 = vadd.f32 %v284, 0.0
    %v349 = vadd.f32 %v285, 0.0
    %v350 = vadd.f32 %v286, 0.0
    %v351 = vadd.f32 %v287, 0.0
    %v352 = vadd.f32 %v288, 0.0
    %v353 = vadd.f32 %v289, 0.0
    %v354 = vadd.f32 %v290, 0.0
    %v355 = vadd.f32 %v291, 0.0
    %v356 = vadd.f32 %v292, 0.0
    %v357 = vadd.f32 %v293, 0.0
    %v358 = vadd.f32 %v294, 0.0
    %v359 = vadd.f32 %v295, 0.0
    %v360 = vadd.f32 %v296, 0.0
    %v361 = vadd.f32 %v297, 0.0
    %v362 = vadd.f32 %v298, 0.0
    %v363 = vadd.f32 %v299, 0.0
    %v364 = vadd.f32 %v300, 0.0
    %v365 = vadd.f32 %v301, 0.0
    %v366 = vadd.f32 %v302, 0.0
    %v367 = vld [vmem:[#allocation2 + $0x1] sm:$0x1]
    %v368 = vadd.s32 %v367, 256
    %v369 = vlaneseq
    %v370 = vshrl.u32 %v369, 7
    %v371 = vsub.s32 0, %v370
    %v372 = vrot.slane %v368, %v371
    %vm373 = vcmp.eq.s32.totalorder %v42, %v372
    %vm374 = vcmp.eq.s32.totalorder %v43, %v372
    %vm375 = vcmp.eq.s32.totalorder %v44, %v372
    %vm376 = vcmp.eq.s32.totalorder %v45, %v372
    %vm377 = vcmp.eq.s32.totalorder %v46, %v372
    %vm378 = vcmp.eq.s32.totalorder %v47, %v372
    %vm379 = vcmp.eq.s32.totalorder %v48, %v372
    %vm380 = vcmp.eq.s32.totalorder %v49, %v372
    %vm381 = vcmp.eq.s32.totalorder %v50, %v372
    %vm382 = vcmp.eq.s32.totalorder %v51, %v372
    %vm383 = vcmp.eq.s32.totalorder %v52, %v372
    %vm384 = vcmp.eq.s32.totalorder %v53, %v372
    %vm385 = vcmp.eq.s32.totalorder %v54, %v372
    %vm386 = vcmp.eq.s32.totalorder %v55, %v372
    %vm387 = vcmp.eq.s32.totalorder %v56, %v372
    %vm388 = vcmp.eq.s32.totalorder %v57, %v372
    %vm389 = vcmp.eq.s32.totalorder %v58, %v372
    %vm390 = vcmp.eq.s32.totalorder %v59, %v372
    %vm391 = vcmp.eq.s32.totalorder %v60, %v372
    %vm392 = vcmp.eq.s32.totalorder %v61, %v372
    %vm393 = vcmp.eq.s32.totalorder %v62, %v372
    %vm394 = vcmp.eq.s32.totalorder %v63, %v372
    %vm395 = vcmp.eq.s32.totalorder %v64, %v372
    %vm396 = vcmp.eq.s32.totalorder %v65, %v372
    %vm397 = vcmp.eq.s32.totalorder %v66, %v372
    %vm398 = vcmp.eq.s32.totalorder %v67, %v372
    %vm399 = vcmp.eq.s32.totalorder %v68, %v372
    %vm400 = vcmp.eq.s32.totalorder %v69, %v372
    %vm401 = vcmp.eq.s32.totalorder %v70, %v372
    %vm402 = vcmp.eq.s32.totalorder %v71, %v372
    %vm403 = vcmp.eq.s32.totalorder %v72, %v372
    %vm404 = vcmp.eq.s32.totalorder %v73, %v372
    %vm405 = vcmp.eq.s32.totalorder %v74, %v372
    %vm406 = vcmp.eq.s32.totalorder %v75, %v372
    %vm407 = vcmp.eq.s32.totalorder %v76, %v372
    %vm408 = vcmp.eq.s32.totalorder %v77, %v372
    %vm409 = vcmp.eq.s32.totalorder %v78, %v372
    %vm410 = vcmp.eq.s32.totalorder %v79, %v372
    %vm411 = vcmp.eq.s32.totalorder %v80, %v372
    %vm412 = vcmp.eq.s32.totalorder %v81, %v372
    %vm413 = vcmp.eq.s32.totalorder %v82, %v372
    %vm414 = vcmp.eq.s32.totalorder %v83, %v372
    %vm415 = vcmp.eq.s32.totalorder %v84, %v372
    %vm416 = vcmp.eq.s32.totalorder %v85, %v372
    %vm417 = vcmp.eq.s32.totalorder %v86, %v372
    %vm418 = vcmp.eq.s32.totalorder %v87, %v372
    %vm419 = vcmp.eq.s32.totalorder %v88, %v372
    %vm420 = vcmp.eq.s32.totalorder %v89, %v372
    %vm421 = vcmp.eq.s32.totalorder %v90, %v372
    %vm422 = vcmp.eq.s32.totalorder %v91, %v372
    %vm423 = vcmp.eq.s32.totalorder %v92, %v372
    %vm424 = vcmp.eq.s32.totalorder %v93, %v372
    %vm425 = vcmp.eq.s32.totalorder %v94, %v372
    %vm426 = vcmp.eq.s32.totalorder %v95, %v372
    %vm427 = vcmp.eq.s32.totalorder %v96, %v372
    %vm428 = vcmp.eq.s32.totalorder %v97, %v372
    %vm429 = vcmp.eq.s32.totalorder %v98, %v372
    %vm430 = vcmp.eq.s32.totalorder %v99, %v372
    %vm431 = vcmp.eq.s32.totalorder %v100, %v372
    %vm432 = vcmp.eq.s32.totalorder %v101, %v372
    %vm433 = vcmp.eq.s32.totalorder %v102, %v372
    %vm434 = vcmp.eq.s32.totalorder %v103, %v372
    %vm435 = vcmp.eq.s32.totalorder %v104, %v372
    %vm436 = vcmp.eq.s32.totalorder %v105, %v372
    %v437 = vsel %vm373, 1, 0
    %v438 = vsel %vm374, 1, 0
    %v439 = vsel %vm375, 1, 0
    %v440 = vsel %vm376, 1, 0
    %v441 = vsel %vm377, 1, 0
    %v442 = vsel %vm378, 1, 0
    %v443 = vsel %vm379, 1, 0
    %v444 = vsel %vm380, 1, 0
    %v445 = vsel %vm381, 1, 0
    %v446 = vsel %vm382, 1, 0
    %v447 = vsel %vm383, 1, 0
    %v448 = vsel %vm384, 1, 0
    %v449 = vsel %vm385, 1, 0
    %v450 = vsel %vm386, 1, 0
    %v451 = vsel %vm387, 1, 0
    %v452 = vsel %vm388, 1, 0
    %v453 = vsel %vm389, 1, 0
    %v454 = vsel %vm390, 1, 0
    %v455 = vsel %vm391, 1, 0
    %v456 = vsel %vm392, 1, 0
    %v457 = vsel %vm393, 1, 0
    %v458 = vsel %vm394, 1, 0
    %v459 = vsel %vm395, 1, 0
    %v460 = vsel %vm396, 1, 0
    %v461 = vsel %vm397, 1, 0
    %v462 = vsel %vm398, 1, 0
    %v463 = vsel %vm399, 1, 0
    %v464 = vsel %vm400, 1, 0
    %v465 = vsel %vm401, 1, 0
    %v466 = vsel %vm402, 1, 0
    %v467 = vsel %vm403, 1, 0
    %v468 = vsel %vm404, 1, 0
    %v469 = vsel %vm405, 1, 0
    %v470 = vsel %vm406, 1, 0
    %v471 = vsel %vm407, 1, 0
    %v472 = vsel %vm408, 1, 0
    %v473 = vsel %vm409, 1, 0
    %v474 = vsel %vm410, 1, 0
    %v475 = vsel %vm411, 1, 0
    %v476 = vsel %vm412, 1, 0
    %v477 = vsel %vm413, 1, 0
    %v478 = vsel %vm414, 1, 0
    %v479 = vsel %vm415, 1, 0
    %v480 = vsel %vm416, 1, 0
    %v481 = vsel %vm417, 1, 0
    %v482 = vsel %vm418, 1, 0
    %v483 = vsel %vm419, 1, 0
    %v484 = vsel %vm420, 1, 0
    %v485 = vsel %vm421, 1, 0
    %v486 = vsel %vm422, 1, 0
    %v487 = vsel %vm423, 1, 0
    %v488 = vsel %vm424, 1, 0
    %v489 = vsel %vm425, 1, 0
    %v490 = vsel %vm426, 1, 0
    %v491 = vsel %vm427, 1, 0
    %v492 = vsel %vm428, 1, 0
    %v493 = vsel %vm429, 1, 0
    %v494 = vsel %vm430, 1, 0
    %v495 = vsel %vm431, 1, 0
    %v496 = vsel %vm432, 1, 0
    %v497 = vsel %vm433, 1, 0
    %v498 = vsel %vm434, 1, 0
    %v499 = vsel %vm435, 1, 0
    %v500 = vsel %vm436, 1, 0
    %v501 = vcvt.s32.f32 %v437
    %v502 = vcvt.s32.f32 %v438
    %v503 = vcvt.s32.f32 %v439
    %v504 = vcvt.s32.f32 %v440
    %v505 = vcvt.s32.f32 %v441
    %v506 = vcvt.s32.f32 %v442
    %v507 = vcvt.s32.f32 %v443
    %v508 = vcvt.s32.f32 %v444
    %v509 = vcvt.s32.f32 %v445
    %v510 = vcvt.s32.f32 %v446
    %v511 = vcvt.s32.f32 %v447
    %v512 = vcvt.s32.f32 %v448
    %v513 = vcvt.s32.f32 %v449
    %v514 = vcvt.s32.f32 %v450
    %v515 = vcvt.s32.f32 %v451
    %v516 = vcvt.s32.f32 %v452
    %v517 = vcvt.s32.f32 %v453
    %v518 = vcvt.s32.f32 %v454
    %v519 = vcvt.s32.f32 %v455
    %v520 = vcvt.s32.f32 %v456
    %v521 = vcvt.s32.f32 %v457
    %v522 = vcvt.s32.f32 %v458
    %v523 = vcvt.s32.f32 %v459
    %v524 = vcvt.s32.f32 %v460
    %v525 = vcvt.s32.f32 %v461
    %v526 = vcvt.s32.f32 %v462
    %v527 = vcvt.s32.f32 %v463
    %v528 = vcvt.s32.f32 %v464
    %v529 = vcvt.s32.f32 %v465
    %v530 = vcvt.s32.f32 %v466
    %v531 = vcvt.s32.f32 %v467
    %v532 = vcvt.s32.f32 %v468
    %v533 = vcvt.s32.f32 %v469
    %v534 = vcvt.s32.f32 %v470
    %v535 = vcvt.s32.f32 %v471
    %v536 = vcvt.s32.f32 %v472
    %v537 = vcvt.s32.f32 %v473
    %v538 = vcvt.s32.f32 %v474
    %v539 = vcvt.s32.f32 %v475
    %v540 = vcvt.s32.f32 %v476
    %v541 = vcvt.s32.f32 %v477
    %v542 = vcvt.s32.f32 %v478
    %v543 = vcvt.s32.f32 %v479
    %v544 = vcvt.s32.f32 %v480
    %v545 = vcvt.s32.f32 %v481
    %v546 = vcvt.s32.f32 %v482
    %v547 = vcvt.s32.f32 %v483
    %v548 = vcvt.s32.f32 %v484
    %v549 = vcvt.s32.f32 %v485
    %v550 = vcvt.s32.f32 %v486
    %v551 = vcvt.s32.f32 %v487
    %v552 = vcvt.s32.f32 %v488
    %v553 = vcvt.s32.f32 %v489
    %v554 = vcvt.s32.f32 %v490
    %v555 = vcvt.s32.f32 %v491
    %v556 = vcvt.s32.f32 %v492
    %v557 = vcvt.s32.f32 %v493
    %v558 = vcvt.s32.f32 %v494
    %v559 = vcvt.s32.f32 %v495
    %v560 = vcvt.s32.f32 %v496
    %v561 = vcvt.s32.f32 %v497
    %v562 = vcvt.s32.f32 %v498
    %v563 = vcvt.s32.f32 %v499
    %v564 = vcvt.s32.f32 %v500
    %v565 = vadd.f32 %v303, %v501
    %v566 = vadd.f32 %v304, %v502
    %v567 = vadd.f32 %v305, %v503
    %v568 = vadd.f32 %v306, %v504
    %v569 = vadd.f32 %v307, %v505
    %v570 = vadd.f32 %v308, %v506
    %v571 = vadd.f32 %v309, %v507
    %v572 = vadd.f32 %v310, %v508
    %v573 = vadd.f32 %v311, %v509
    %v574 = vadd.f32 %v312, %v510
    %v575 = vadd.f32 %v313, %v511
    %v576 = vadd.f32 %v314, %v512
    %v577 = vadd.f32 %v315, %v513
    %v578 = vadd.f32 %v316, %v514
    %v579 = vadd.f32 %v317, %v515
    %v580 = vadd.f32 %v318, %v516
    %v581 = vadd.f32 %v319, %v517
    %v582 = vadd.f32 %v320, %v518
    %v583 = vadd.f32 %v321, %v519
    %v584 = vadd.f32 %v322, %v520
    %v585 = vadd.f32 %v323, %v521
    %v586 = vadd.f32 %v324, %v522
    %v587 = vadd.f32 %v325, %v523
    %v588 = vadd.f32 %v326, %v524
    %v589 = vadd.f32 %v327, %v525
    %v590 = vadd.f32 %v328, %v526
    %v591 = vadd.f32 %v329, %v527
    %v592 = vadd.f32 %v330, %v528
    %v593 = vadd.f32 %v331, %v529
    %v594 = vadd.f32 %v332, %v530
    %v595 = vadd.f32 %v333, %v531
    %v596 = vadd.f32 %v334, %v532
    %v597 = vadd.f32 %v335, %v533
    %v598 = vadd.f32 %v336, %v534
    %v599 = vadd.f32 %v337, %v535
    %v600 = vadd.f32 %v338, %v536
    %v601 = vadd.f32 %v339, %v537
    %v602 = vadd.f32 %v340, %v538
    %v603 = vadd.f32 %v341, %v539
    %v604 = vadd.f32 %v342, %v540
    %v605 = vadd.f32 %v343, %v541
    %v606 = vadd.f32 %v344, %v542
    %v607 = vadd.f32 %v345, %v543
    %v608 = vadd.f32 %v346, %v544
    %v609 = vadd.f32 %v347, %v545
    %v610 = vadd.f32 %v348, %v546
    %v611 = vadd.f32 %v349, %v547
    %v612 = vadd.f32 %v350, %v548
    %v613 = vadd.f32 %v351, %v549
    %v614 = vadd.f32 %v352, %v550
    %v615 = vadd.f32 %v353, %v551
    %v616 = vadd.f32 %v354, %v552
    %v617 = vadd.f32 %v355, %v553
    %v618 = vadd.f32 %v356, %v554
    %v619 = vadd.f32 %v357, %v555
    %v620 = vadd.f32 %v358, %v556
    %v621 = vadd.f32 %v359, %v557
    %v622 = vadd.f32 %v360, %v558
    %v623 = vadd.f32 %v361, %v559
    %v624 = vadd.f32 %v362, %v560
    %v625 = vadd.f32 %v363, %v561
    %v626 = vadd.f32 %v364, %v562
    %v627 = vadd.f32 %v365, %v563
    %v628 = vadd.f32 %v366, %v564
    %v629 = vld [vmem:[#allocation5] sm:$0xff]
    %v630 = vld [vmem:[#allocation5 + $0x8] sm:$0xff]
    %v631 = vld [vmem:[#allocation5 + $0x10] sm:$0xff]
    %v632 = vld [vmem:[#allocation5 + $0x18] sm:$0xff]
    %633 = vmatprep.subr.mxu0 0.0
    %634 = vmatpush1.msra.mxu0 %v580
    %635 = vmatprep.subr.mxu0 0.0
    %636 = vmatpush1.msra.mxu0 %v579
    %637 = vmatprep.subr.mxu0 0.0
    %638 = vmatpush1.msra.mxu0 %v578
    %639 = vmatprep.subr.mxu0 0.0
    %640 = vmatpush1.msra.mxu0 %v577
    %641 = vmatprep.subr.mxu0 0.0
    %642 = vmatpush1.msra.mxu0 %v576
    %643 = vmatprep.subr.mxu0 0.0
    %644 = vmatpush1.msra.mxu0 %v575
    %645 = vmatprep.subr.mxu0 0.0
    %646 = vmatpush1.msra.mxu0 %v574
    %647 = vmatprep.subr.mxu0 0.0
    %648 = vmatpush1.msra.mxu0 %v573
    %649 = vmatprep.subr.mxu0 0.0
    %650 = vmatpush1.msra.mxu0 %v572
    %651 = vmatprep.subr.mxu0 0.0
    %652 = vmatpush1.msra.mxu0 %v571
    %653 = vmatprep.subr.mxu0 0.0
    %654 = vmatpush1.msra.mxu0 %v570
    %655 = vmatprep.subr.mxu0 0.0
    %656 = vmatpush1.msra.mxu0 %v569
    %657 = vmatprep.subr.mxu0 0.0
    %658 = vmatpush1.msra.mxu0 %v568
    %659 = vmatprep.subr.mxu0 0.0
    %660 = vmatpush1.msra.mxu0 %v567
    %661 = vmatprep.subr.mxu0 0.0
    %662 = vmatpush1.msra.mxu0 %v566
    %663 = vmatprep.subr.mxu0 0.0
    %664 = vmatpush1.msra.mxu0 %v565
    %665 = vmatprep.subr.mxu0 0.0
    %666 = vmatpush2.msra.mxu0 %v596
    %667 = vmatprep.subr.mxu0 0.0
    %668 = vmatpush2.msra.mxu0 %v595
    %669 = vmatprep.subr.mxu0 0.0
    %670 = vmatpush2.msra.mxu0 %v594
    %671 = vmatprep.subr.mxu0 0.0
    %672 = vmatpush2.msra.mxu0 %v593
    %673 = vmatprep.subr.mxu0 0.0
    %674 = vmatpush2.msra.mxu0 %v592
    %675 = vmatprep.subr.mxu0 0.0
    %676 = vmatpush2.msra.mxu0 %v591
    %677 = vmatprep.subr.mxu0 0.0
    %678 = vmatpush2.msra.mxu0 %v590
    %679 = vmatprep.subr.mxu0 0.0
    %680 = vmatpush2.msra.mxu0 %v589
    %681 = vmatprep.subr.mxu0 0.0
    %682 = vmatpush2.msra.mxu0 %v588
    %683 = vmatprep.subr.mxu0 0.0
    %684 = vmatpush2.msra.mxu0 %v587
    %685 = vmatprep.subr.mxu0 0.0
    %686 = vmatpush2.msra.mxu0 %v586
    %687 = vmatprep.subr.mxu0 0.0
    %688 = vmatpush2.msra.mxu0 %v585
    %689 = vmatprep.subr.mxu0 0.0
    %690 = vmatpush2.msra.mxu0 %v584
    %691 = vmatprep.subr.mxu0 0.0
    %692 = vmatpush2.msra.mxu0 %v583
    %693 = vmatprep.subr.mxu0 0.0
    %694 = vmatpush2.msra.mxu0 %v582
    %695 = vmatprep.subr.mxu0 0.0
    %696 = vmatpush2.msra.mxu0 %v581
    %697 = vmatprep.mubr.f32.mxu0 %v630
    %698 = vmatmul.mubr.f32.gmra.mxu0 %v629
    %v699 = vpop.f32.mrf.mxu0
    %v700 = vadd.f32 0.0, %v699
    %v701 = vpop.f32.mrf.mxu0
    %702 = vdwg.mxu0
    %703 = vmatprep.subr.mxu0 0.0
    %704 = vmatpush1.msra.mxu0 %v612
    %705 = vmatprep.subr.mxu0 0.0
    %706 = vmatpush1.msra.mxu0 %v611
    %707 = vmatprep.subr.mxu0 0.0
    %708 = vmatpush1.msra.mxu0 %v610
    %709 = vmatprep.subr.mxu0 0.0
    %710 = vmatpush1.msra.mxu0 %v609
    %711 = vmatprep.subr.mxu0 0.0
    %712 = vmatpush1.msra.mxu0 %v608
    %713 = vmatprep.subr.mxu0 0.0
    %714 = vmatpush1.msra.mxu0 %v607
    %715 = vmatprep.subr.mxu0 0.0
    %716 = vmatpush1.msra.mxu0 %v606
    %717 = vmatprep.subr.mxu0 0.0
    %718 = vmatpush1.msra.mxu0 %v605
    %719 = vmatprep.subr.mxu0 0.0
    %720 = vmatpush1.msra.mxu0 %v604
    %721 = vmatprep.subr.mxu0 0.0
    %722 = vmatpush1.msra.mxu0 %v603
    %723 = vmatprep.subr.mxu0 0.0
    %724 = vmatpush1.msra.mxu0 %v602
    %725 = vmatprep.subr.mxu0 0.0
    %726 = vmatpush1.msra.mxu0 %v601
    %727 = vmatprep.subr.mxu0 0.0
    %728 = vmatpush1.msra.mxu0 %v600
    %729 = vmatprep.subr.mxu0 0.0
    %730 = vmatpush1.msra.mxu0 %v599
    %731 = vmatprep.subr.mxu0 0.0
    %732 = vmatpush1.msra.mxu0 %v598
    %733 = vmatprep.subr.mxu0 0.0
    %734 = vmatpush1.msra.mxu0 %v597
    %735 = vmatprep.subr.mxu0 0.0
    %736 = vmatpush2.msra.mxu0 %v628
    %737 = vmatprep.subr.mxu0 0.0
    %738 = vmatpush2.msra.mxu0 %v627
    %739 = vmatprep.subr.mxu0 0.0
    %740 = vmatpush2.msra.mxu0 %v626
    %741 = vmatprep.subr.mxu0 0.0
    %742 = vmatpush2.msra.mxu0 %v625
    %743 = vmatprep.subr.mxu0 0.0
    %744 = vmatpush2.msra.mxu0 %v624
    %745 = vmatprep.subr.mxu0 0.0
    %746 = vmatpush2.msra.mxu0 %v623
    %747 = vmatprep.subr.mxu0 0.0
    %748 = vmatpush2.msra.mxu0 %v622
    %749 = vmatprep.subr.mxu0 0.0
    %750 = vmatpush2.msra.mxu0 %v621
    %751 = vmatprep.subr.mxu0 0.0
    %752 = vmatpush2.msra.mxu0 %v620
    %753 = vmatprep.subr.mxu0 0.0
    %754 = vmatpush2.msra.mxu0 %v619
    %755 = vmatprep.subr.mxu0 0.0
    %756 = vmatpush2.msra.mxu0 %v618
    %757 = vmatprep.subr.mxu0 0.0
    %758 = vmatpush2.msra.mxu0 %v617
    %759 = vmatprep.subr.mxu0 0.0
    %760 = vmatpush2.msra.mxu0 %v616
    %761 = vmatprep.subr.mxu0 0.0
    %762 = vmatpush2.msra.mxu0 %v615
    %763 = vmatprep.subr.mxu0 0.0
    %764 = vmatpush2.msra.mxu0 %v614
    %765 = vmatprep.subr.mxu0 0.0
    %766 = vmatpush2.msra.mxu0 %v613
    %767 = vmatprep.mubr.f32.mxu0 %v632
    %768 = vmatmul.mubr.f32.gmra.mxu0 %v631
    %v769 = vpop.f32.mrf.mxu0
    %v770 = vadd.f32 %v700, %v769
    %v771 = vpop.f32.mrf.mxu0
    %772 = vdwg.mxu0
    %s773 = scalar_lea.vmem [#allocation2], 2
    %v774 = vld [vmem:[%s773] sm:$0x1]
    %v775 = vlaneseq
    %v776 = vshrl.u32 %v775, 7
    %v777 = vsub.s32 0, %v776
    %v778 = vrot.slane %v774, %v777
    %vm779 = vcmp.eq.s32.totalorder %v42, %v778
    %vm780 = vcmp.eq.s32.totalorder %v43, %v778
    %vm781 = vcmp.eq.s32.totalorder %v44, %v778
    %vm782 = vcmp.eq.s32.totalorder %v45, %v778
    %vm783 = vcmp.eq.s32.totalorder %v46, %v778
    %vm784 = vcmp.eq.s32.totalorder %v47, %v778
    %vm785 = vcmp.eq.s32.totalorder %v48, %v778
    %vm786 = vcmp.eq.s32.totalorder %v49, %v778
    %vm787 = vcmp.eq.s32.totalorder %v50, %v778
    %vm788 = vcmp.eq.s32.totalorder %v51, %v778
    %vm789 = vcmp.eq.s32.totalorder %v52, %v778
    %vm790 = vcmp.eq.s32.totalorder %v53, %v778
    %vm791 = vcmp.eq.s32.totalorder %v54, %v778
    %vm792 = vcmp.eq.s32.totalorder %v55, %v778
    %vm793 = vcmp.eq.s32.totalorder %v56, %v778
    %vm794 = vcmp.eq.s32.totalorder %v57, %v778
    %vm795 = vcmp.eq.s32.totalorder %v58, %v778
    %vm796 = vcmp.eq.s32.totalorder %v59, %v778
    %vm797 = vcmp.eq.s32.totalorder %v60, %v778
    %vm798 = vcmp.eq.s32.totalorder %v61, %v778
    %vm799 = vcmp.eq.s32.totalorder %v62, %v778
    %vm800 = vcmp.eq.s32.totalorder %v63, %v778
    %vm801 = vcmp.eq.s32.totalorder %v64, %v778
    %vm802 = vcmp.eq.s32.totalorder %v65, %v778
    %vm803 = vcmp.eq.s32.totalorder %v66, %v778
    %vm804 = vcmp.eq.s32.totalorder %v67, %v778
    %vm805 = vcmp.eq.s32.totalorder %v68, %v778
    %vm806 = vcmp.eq.s32.totalorder %v69, %v778
    %vm807 = vcmp.eq.s32.totalorder %v70, %v778
    %vm808 = vcmp.eq.s32.totalorder %v71, %v778
    %vm809 = vcmp.eq.s32.totalorder %v72, %v778
    %vm810 = vcmp.eq.s32.totalorder %v73, %v778
    %vm811 = vcmp.eq.s32.totalorder %v74, %v778
    %vm812 = vcmp.eq.s32.totalorder %v75, %v778
    %vm813 = vcmp.eq.s32.totalorder %v76, %v778
    %vm814 = vcmp.eq.s32.totalorder %v77, %v778
    %vm815 = vcmp.eq.s32.totalorder %v78, %v778
    %vm816 = vcmp.eq.s32.totalorder %v79, %v778
    %vm817 = vcmp.eq.s32.totalorder %v80, %v778
    %vm818 = vcmp.eq.s32.totalorder %v81, %v778
    %vm819 = vcmp.eq.s32.totalorder %v82, %v778
    %vm820 = vcmp.eq.s32.totalorder %v83, %v778
    %vm821 = vcmp.eq.s32.totalorder %v84, %v778
    %vm822 = vcmp.eq.s32.totalorder %v85, %v778
    %vm823 = vcmp.eq.s32.totalorder %v86, %v778
    %vm824 = vcmp.eq.s32.totalorder %v87, %v778
    %vm825 = vcmp.eq.s32.totalorder %v88, %v778
    %vm826 = vcmp.eq.s32.totalorder %v89, %v778
    %vm827 = vcmp.eq.s32.totalorder %v90, %v778
    %vm828 = vcmp.eq.s32.totalorder %v91, %v778
    %vm829 = vcmp.eq.s32.totalorder %v92, %v778
    %vm830 = vcmp.eq.s32.totalorder %v93, %v778
    %vm831 = vcmp.eq.s32.totalorder %v94, %v778
    %vm832 = vcmp.eq.s32.totalorder %v95, %v778
    %vm833 = vcmp.eq.s32.totalorder %v96, %v778
    %vm834 = vcmp.eq.s32.totalorder %v97, %v778
    %vm835 = vcmp.eq.s32.totalorder %v98, %v778
    %vm836 = vcmp.eq.s32.totalorder %v99, %v778
    %vm837 = vcmp.eq.s32.totalorder %v100, %v778
    %vm838 = vcmp.eq.s32.totalorder %v101, %v778
    %vm839 = vcmp.eq.s32.totalorder %v102, %v778
    %vm840 = vcmp.eq.s32.totalorder %v103, %v778
    %vm841 = vcmp.eq.s32.totalorder %v104, %v778
    %vm842 = vcmp.eq.s32.totalorder %v105, %v778
    %v843 = vsel %vm779, 1, 0
    %v844 = vsel %vm780, 1, 0
    %v845 = vsel %vm781, 1, 0
    %v846 = vsel %vm782, 1, 0
    %v847 = vsel %vm783, 1, 0
    %v848 = vsel %vm784, 1, 0
    %v849 = vsel %vm785, 1, 0
    %v850 = vsel %vm786, 1, 0
    %v851 = vsel %vm787, 1, 0
    %v852 = vsel %vm788, 1, 0
    %v853 = vsel %vm789, 1, 0
    %v854 = vsel %vm790, 1, 0
    %v855 = vsel %vm791, 1, 0
    %v856 = vsel %vm792, 1, 0
    %v857 = vsel %vm793, 1, 0
    %v858 = vsel %vm794, 1, 0
    %v859 = vsel %vm795, 1, 0
    %v860 = vsel %vm796, 1, 0
    %v861 = vsel %vm797, 1, 0
    %v862 = vsel %vm798, 1, 0
    %v863 = vsel %vm799, 1, 0
    %v864 = vsel %vm800, 1, 0
    %v865 = vsel %vm801, 1, 0
    %v866 = vsel %vm802, 1, 0
    %v867 = vsel %vm803, 1, 0
    %v868 = vsel %vm804, 1, 0
    %v869 = vsel %vm805, 1, 0
    %v870 = vsel %vm806, 1, 0
    %v871 = vsel %vm807, 1, 0
    %v872 = vsel %vm808, 1, 0
    %v873 = vsel %vm809, 1, 0
    %v874 = vsel %vm810, 1, 0
    %v875 = vsel %vm811, 1, 0
    %v876 = vsel %vm812, 1, 0
    %v877 = vsel %vm813, 1, 0
    %v878 = vsel %vm814, 1, 0
    %v879 = vsel %vm815, 1, 0
    %v880 = vsel %vm816, 1, 0
    %v881 = vsel %vm817, 1, 0
    %v882 = vsel %vm818, 1, 0
    %v883 = vsel %vm819, 1, 0
    %v884 = vsel %vm820, 1, 0
    %v885 = vsel %vm821, 1, 0
    %v886 = vsel %vm822, 1, 0
    %v887 = vsel %vm823, 1, 0
    %v888 = vsel %vm824, 1, 0
    %v889 = vsel %vm825, 1, 0
    %v890 = vsel %vm826, 1, 0
    %v891 = vsel %vm827, 1, 0
    %v892 = vsel %vm828, 1, 0
    %v893 = vsel %vm829, 1, 0
    %v894 = vsel %vm830, 1, 0
    %v895 = vsel %vm831, 1, 0
    %v896 = vsel %vm832, 1, 0
    %v897 = vsel %vm833, 1, 0
    %v898 = vsel %vm834, 1, 0
    %v899 = vsel %vm835, 1, 0
    %v900 = vsel %vm836, 1, 0
    %v901 = vsel %vm837, 1, 0
    %v902 = vsel %vm838, 1, 0
    %v903 = vsel %vm839, 1, 0
    %v904 = vsel %vm840, 1, 0
    %v905 = vsel %vm841, 1, 0
    %v906 = vsel %vm842, 1, 0
    %v907 = vcvt.s32.f32 %v843
    %v908 = vcvt.s32.f32 %v844
    %v909 = vcvt.s32.f32 %v845
    %v910 = vcvt.s32.f32 %v846
    %v911 = vcvt.s32.f32 %v847
    %v912 = vcvt.s32.f32 %v848
    %v913 = vcvt.s32.f32 %v849
    %v914 = vcvt.s32.f32 %v850
    %v915 = vcvt.s32.f32 %v851
    %v916 = vcvt.s32.f32 %v852
    %v917 = vcvt.s32.f32 %v853
    %v918 = vcvt.s32.f32 %v854
    %v919 = vcvt.s32.f32 %v855
    %v920 = vcvt.s32.f32 %v856
    %v921 = vcvt.s32.f32 %v857
    %v922 = vcvt.s32.f32 %v858
    %v923 = vcvt.s32.f32 %v859
    %v924 = vcvt.s32.f32 %v860
    %v925 = vcvt.s32.f32 %v861
    %v926 = vcvt.s32.f32 %v862
    %v927 = vcvt.s32.f32 %v863
    %v928 = vcvt.s32.f32 %v864
    %v929 = vcvt.s32.f32 %v865
    %v930 = vcvt.s32.f32 %v866
    %v931 = vcvt.s32.f32 %v867
    %v932 = vcvt.s32.f32 %v868
    %v933 = vcvt.s32.f32 %v869
    %v934 = vcvt.s32.f32 %v870
    %v935 = vcvt.s32.f32 %v871
    %v936 = vcvt.s32.f32 %v872
    %v937 = vcvt.s32.f32 %v873
    %v938 = vcvt.s32.f32 %v874
    %v939 = vcvt.s32.f32 %v875
    %v940 = vcvt.s32.f32 %v876
    %v941 = vcvt.s32.f32 %v877
    %v942 = vcvt.s32.f32 %v878
    %v943 = vcvt.s32.f32 %v879
    %v944 = vcvt.s32.f32 %v880
    %v945 = vcvt.s32.f32 %v881
    %v946 = vcvt.s32.f32 %v882
    %v947 = vcvt.s32.f32 %v883
    %v948 = vcvt.s32.f32 %v884
    %v949 = vcvt.s32.f32 %v885
    %v950 = vcvt.s32.f32 %v886
    %v951 = vcvt.s32.f32 %v887
    %v952 = vcvt.s32.f32 %v888
    %v953 = vcvt.s32.f32 %v889
    %v954 = vcvt.s32.f32 %v890
    %v955 = vcvt.s32.f32 %v891
    %v956 = vcvt.s32.f32 %v892
    %v957 = vcvt.s32.f32 %v893
    %v958 = vcvt.s32.f32 %v894
    %v959 = vcvt.s32.f32 %v895
    %v960 = vcvt.s32.f32 %v896
    %v961 = vcvt.s32.f32 %v897
    %v962 = vcvt.s32.f32 %v898
    %v963 = vcvt.s32.f32 %v899
    %v964 = vcvt.s32.f32 %v900
    %v965 = vcvt.s32.f32 %v901
    %v966 = vcvt.s32.f32 %v902
    %v967 = vcvt.s32.f32 %v903
    %v968 = vcvt.s32.f32 %v904
    %v969 = vcvt.s32.f32 %v905
    %v970 = vcvt.s32.f32 %v906
    %v971 = vadd.f32 %v907, 0.0
    %v972 = vadd.f32 %v908, 0.0
    %v973 = vadd.f32 %v909, 0.0
    %v974 = vadd.f32 %v910, 0.0
    %v975 = vadd.f32 %v911, 0.0
    %v976 = vadd.f32 %v912, 0.0
    %v977 = vadd.f32 %v913, 0.0
    %v978 = vadd.f32 %v914, 0.0
    %v979 = vadd.f32 %v915, 0.0
    %v980 = vadd.f32 %v916, 0.0
    %v981 = vadd.f32 %v917, 0.0
    %v982 = vadd.f32 %v918, 0.0
    %v983 = vadd.f32 %v919, 0.0
    %v984 = vadd.f32 %v920, 0.0
    %v985 = vadd.f32 %v921, 0.0
    %v986 = vadd.f32 %v922, 0.0
    %v987 = vadd.f32 %v923, 0.0
    %v988 = vadd.f32 %v924, 0.0
    %v989 = vadd.f32 %v925, 0.0
    %v990 = vadd.f32 %v926, 0.0
    %v991 = vadd.f32 %v927, 0.0
    %v992 = vadd.f32 %v928, 0.0
    %v993 = vadd.f32 %v929, 0.0
    %v994 = vadd.f32 %v930, 0.0
    %v995 = vadd.f32 %v931, 0.0
    %v996 = vadd.f32 %v932, 0.0
    %v997 = vadd.f32 %v933, 0.0
    %v998 = vadd.f32 %v934, 0.0
    %v999 = vadd.f32 %v935, 0.0
    %v1000 = vadd.f32 %v936, 0.0
    %v1001 = vadd.f32 %v937, 0.0
    %v1002 = vadd.f32 %v938, 0.0
    %v1003 = vadd.f32 %v939, 0.0
    %v1004 = vadd.f32 %v940, 0.0
    %v1005 = vadd.f32 %v941, 0.0
    %v1006 = vadd.f32 %v942, 0.0
    %v1007 = vadd.f32 %v943, 0.0
    %v1008 = vadd.f32 %v944, 0.0
    %v1009 = vadd.f32 %v945, 0.0
    %v1010 = vadd.f32 %v946, 0.0
    %v1011 = vadd.f32 %v947, 0.0
    %v1012 = vadd.f32 %v948, 0.0
    %v1013 = vadd.f32 %v949, 0.0
    %v1014 = vadd.f32 %v950, 0.0
    %v1015 = vadd.f32 %v951, 0.0
    %v1016 = vadd.f32 %v952, 0.0
    %v1017 = vadd.f32 %v953, 0.0
    %v1018 = vadd.f32 %v954, 0.0
    %v1019 = vadd.f32 %v955, 0.0
    %v1020 = vadd.f32 %v956, 0.0
    %v1021 = vadd.f32 %v957, 0.0
    %v1022 = vadd.f32 %v958, 0.0
    %v1023 = vadd.f32 %v959, 0.0
    %v1024 = vadd.f32 %v960, 0.0
    %v1025 = vadd.f32 %v961, 0.0
    %v1026 = vadd.f32 %v962, 0.0
    %v1027 = vadd.f32 %v963, 0.0
    %v1028 = vadd.f32 %v964, 0.0
    %v1029 = vadd.f32 %v965, 0.0
    %v1030 = vadd.f32 %v966, 0.0
    %v1031 = vadd.f32 %v967, 0.0
    %v1032 = vadd.f32 %v968, 0.0
    %v1033 = vadd.f32 %v969, 0.0
    %v1034 = vadd.f32 %v970, 0.0
    %v1035 = vld [vmem:[%s773 + $0x1] sm:$0x1]
    %v1036 = vadd.s32 %v1035, 256
    %v1037 = vlaneseq
    %v1038 = vshrl.u32 %v1037, 7
    %v1039 = vsub.s32 0, %v1038
    %v1040 = vrot.slane %v1036, %v1039
    %vm1041 = vcmp.eq.s32.totalorder %v42, %v1040
    %vm1042 = vcmp.eq.s32.totalorder %v43, %v1040
    %vm1043 = vcmp.eq.s32.totalorder %v44, %v1040
    %vm1044 = vcmp.eq.s32.totalorder %v45, %v1040
    %vm1045 = vcmp.eq.s32.totalorder %v46, %v1040
    %vm1046 = vcmp.eq.s32.totalorder %v47, %v1040
    %vm1047 = vcmp.eq.s32.totalorder %v48, %v1040
    %vm1048 = vcmp.eq.s32.totalorder %v49, %v1040
    %vm1049 = vcmp.eq.s32.totalorder %v50, %v1040
    %vm1050 = vcmp.eq.s32.totalorder %v51, %v1040
    %vm1051 = vcmp.eq.s32.totalorder %v52, %v1040
    %vm1052 = vcmp.eq.s32.totalorder %v53, %v1040
    %vm1053 = vcmp.eq.s32.totalorder %v54, %v1040
    %vm1054 = vcmp.eq.s32.totalorder %v55, %v1040
    %vm1055 = vcmp.eq.s32.totalorder %v56, %v1040
    %vm1056 = vcmp.eq.s32.totalorder %v57, %v1040
    %vm1057 = vcmp.eq.s32.totalorder %v58, %v1040
    %vm1058 = vcmp.eq.s32.totalorder %v59, %v1040
    %vm1059 = vcmp.eq.s32.totalorder %v60, %v1040
    %vm1060 = vcmp.eq.s32.totalorder %v61, %v1040
    %vm1061 = vcmp.eq.s32.totalorder %v62, %v1040
    %vm1062 = vcmp.eq.s32.totalorder %v63, %v1040
    %vm1063 = vcmp.eq.s32.totalorder %v64, %v1040
    %vm1064 = vcmp.eq.s32.totalorder %v65, %v1040
    %vm1065 = vcmp.eq.s32.totalorder %v66, %v1040
    %vm1066 = vcmp.eq.s32.totalorder %v67, %v1040
    %vm1067 = vcmp.eq.s32.totalorder %v68, %v1040
    %vm1068 = vcmp.eq.s32.totalorder %v69, %v1040
    %vm1069 = vcmp.eq.s32.totalorder %v70, %v1040
    %vm1070 = vcmp.eq.s32.totalorder %v71, %v1040
    %vm1071 = vcmp.eq.s32.totalorder %v72, %v1040
    %vm1072 = vcmp.eq.s32.totalorder %v73, %v1040
    %vm1073 = vcmp.eq.s32.totalorder %v74, %v1040
    %vm1074 = vcmp.eq.s32.totalorder %v75, %v1040
    %vm1075 = vcmp.eq.s32.totalorder %v76, %v1040
    %vm1076 = vcmp.eq.s32.totalorder %v77, %v1040
    %vm1077 = vcmp.eq.s32.totalorder %v78, %v1040
    %vm1078 = vcmp.eq.s32.totalorder %v79, %v1040
    %vm1079 = vcmp.eq.s32.totalorder %v80, %v1040
    %vm1080 = vcmp.eq.s32.totalorder %v81, %v1040
    %vm1081 = vcmp.eq.s32.totalorder %v82, %v1040
    %vm1082 = vcmp.eq.s32.totalorder %v83, %v1040
    %vm1083 = vcmp.eq.s32.totalorder %v84, %v1040
    %vm1084 = vcmp.eq.s32.totalorder %v85, %v1040
    %vm1085 = vcmp.eq.s32.totalorder %v86, %v1040
    %vm1086 = vcmp.eq.s32.totalorder %v87, %v1040
    %vm1087 = vcmp.eq.s32.totalorder %v88, %v1040
    %vm1088 = vcmp.eq.s32.totalorder %v89, %v1040
    %vm1089 = vcmp.eq.s32.totalorder %v90, %v1040
    %vm1090 = vcmp.eq.s32.totalorder %v91, %v1040
    %vm1091 = vcmp.eq.s32.totalorder %v92, %v1040
    %vm1092 = vcmp.eq.s32.totalorder %v93, %v1040
    %vm1093 = vcmp.eq.s32.totalorder %v94, %v1040
    %vm1094 = vcmp.eq.s32.totalorder %v95, %v1040
    %vm1095 = vcmp.eq.s32.totalorder %v96, %v1040
    %vm1096 = vcmp.eq.s32.totalorder %v97, %v1040
    %vm1097 = vcmp.eq.s32.totalorder %v98, %v1040
    %vm1098 = vcmp.eq.s32.totalorder %v99, %v1040
    %vm1099 = vcmp.eq.s32.totalorder %v100, %v1040
    %vm1100 = vcmp.eq.s32.totalorder %v101, %v1040
    %vm1101 = vcmp.eq.s32.totalorder %v102, %v1040
    %vm1102 = vcmp.eq.s32.totalorder %v103, %v1040
    %vm1103 = vcmp.eq.s32.totalorder %v104, %v1040
    %vm1104 = vcmp.eq.s32.totalorder %v105, %v1040
    %v1105 = vsel %vm1041, 1, 0
    %v1106 = vsel %vm1042, 1, 0
    %v1107 = vsel %vm1043, 1, 0
    %v1108 = vsel %vm1044, 1, 0
    %v1109 = vsel %vm1045, 1, 0
    %v1110 = vsel %vm1046, 1, 0
    %v1111 = vsel %vm1047, 1, 0
    %v1112 = vsel %vm1048, 1, 0
    %v1113 = vsel %vm1049, 1, 0
    %v1114 = vsel %vm1050, 1, 0
    %v1115 = vsel %vm1051, 1, 0
    %v1116 = vsel %vm1052, 1, 0
    %v1117 = vsel %vm1053, 1, 0
    %v1118 = vsel %vm1054, 1, 0
    %v1119 = vsel %vm1055, 1, 0
    %v1120 = vsel %vm1056, 1, 0
    %v1121 = vsel %vm1057, 1, 0
    %v1122 = vsel %vm1058, 1, 0
    %v1123 = vsel %vm1059, 1, 0
    %v1124 = vsel %vm1060, 1, 0
    %v1125 = vsel %vm1061, 1, 0
    %v1126 = vsel %vm1062, 1, 0
    %v1127 = vsel %vm1063, 1, 0
    %v1128 = vsel %vm1064, 1, 0
    %v1129 = vsel %vm1065, 1, 0
    %v1130 = vsel %vm1066, 1, 0
    %v1131 = vsel %vm1067, 1, 0
    %v1132 = vsel %vm1068, 1, 0
    %v1133 = vsel %vm1069, 1, 0
    %v1134 = vsel %vm1070, 1, 0
    %v1135 = vsel %vm1071, 1, 0
    %v1136 = vsel %vm1072, 1, 0
    %v1137 = vsel %vm1073, 1, 0
    %v1138 = vsel %vm1074, 1, 0
    %v1139 = vsel %vm1075, 1, 0
    %v1140 = vsel %vm1076, 1, 0
    %v1141 = vsel %vm1077, 1, 0
    %v1142 = vsel %vm1078, 1, 0
    %v1143 = vsel %vm1079, 1, 0
    %v1144 = vsel %vm1080, 1, 0
    %v1145 = vsel %vm1081, 1, 0
    %v1146 = vsel %vm1082, 1, 0
    %v1147 = vsel %vm1083, 1, 0
    %v1148 = vsel %vm1084, 1, 0
    %v1149 = vsel %vm1085, 1, 0
    %v1150 = vsel %vm1086, 1, 0
    %v1151 = vsel %vm1087, 1, 0
    %v1152 = vsel %vm1088, 1, 0
    %v1153 = vsel %vm1089, 1, 0
    %v1154 = vsel %vm1090, 1, 0
    %v1155 = vsel %vm1091, 1, 0
    %v1156 = vsel %vm1092, 1, 0
    %v1157 = vsel %vm1093, 1, 0
    %v1158 = vsel %vm1094, 1, 0
    %v1159 = vsel %vm1095, 1, 0
    %v1160 = vsel %vm1096, 1, 0
    %v1161 = vsel %vm1097, 1, 0
    %v1162 = vsel %vm1098, 1, 0
    %v1163 = vsel %vm1099, 1, 0
    %v1164 = vsel %vm1100, 1, 0
    %v1165 = vsel %vm1101, 1, 0
    %v1166 = vsel %vm1102, 1, 0
    %v1167 = vsel %vm1103, 1, 0
    %v1168 = vsel %vm1104, 1, 0
    %v1169 = vcvt.s32.f32 %v1105
    %v1170 = vcvt.s32.f32 %v1106
    %v1171 = vcvt.s32.f32 %v1107
    %v1172 = vcvt.s32.f32 %v1108
    %v1173 = vcvt.s32.f32 %v1109
    %v1174 = vcvt.s32.f32 %v1110
    %v1175 = vcvt.s32.f32 %v1111
    %v1176 = vcvt.s32.f32 %v1112
    %v1177 = vcvt.s32.f32 %v1113
    %v1178 = vcvt.s32.f32 %v1114
    %v1179 = vcvt.s32.f32 %v1115
    %v1180 = vcvt.s32.f32 %v1116
    %v1181 = vcvt.s32.f32 %v1117
    %v1182 = vcvt.s32.f32 %v1118
    %v1183 = vcvt.s32.f32 %v1119
    %v1184 = vcvt.s32.f32 %v1120
    %v1185 = vcvt.s32.f32 %v1121
    %v1186 = vcvt.s32.f32 %v1122
    %v1187 = vcvt.s32.f32 %v1123
    %v1188 = vcvt.s32.f32 %v1124
    %v1189 = vcvt.s32.f32 %v1125
    %v1190 = vcvt.s32.f32 %v1126
    %v1191 = vcvt.s32.f32 %v1127
    %v1192 = vcvt.s32.f32 %v1128
    %v1193 = vcvt.s32.f32 %v1129
    %v1194 = vcvt.s32.f32 %v1130
    %v1195 = vcvt.s32.f32 %v1131
    %v1196 = vcvt.s32.f32 %v1132
    %v1197 = vcvt.s32.f32 %v1133
    %v1198 = vcvt.s32.f32 %v1134
    %v1199 = vcvt.s32.f32 %v1135
    %v1200 = vcvt.s32.f32 %v1136
    %v1201 = vcvt.s32.f32 %v1137
    %v1202 = vcvt.s32.f32 %v1138
    %v1203 = vcvt.s32.f32 %v1139
    %v1204 = vcvt.s32.f32 %v1140
    %v1205 = vcvt.s32.f32 %v1141
    %v1206 = vcvt.s32.f32 %v1142
    %v1207 = vcvt.s32.f32 %v1143
    %v1208 = vcvt.s32.f32 %v1144
    %v1209 = vcvt.s32.f32 %v1145
    %v1210 = vcvt.s32.f32 %v1146
    %v1211 = vcvt.s32.f32 %v1147
    %v1212 = vcvt.s32.f32 %v1148
    %v1213 = vcvt.s32.f32 %v1149
    %v1214 = vcvt.s32.f32 %v1150
    %v1215 = vcvt.s32.f32 %v1151
    %v1216 = vcvt.s32.f32 %v1152
    %v1217 = vcvt.s32.f32 %v1153
    %v1218 = vcvt.s32.f32 %v1154
    %v1219 = vcvt.s32.f32 %v1155
    %v1220 = vcvt.s32.f32 %v1156
    %v1221 = vcvt.s32.f32 %v1157
    %v1222 = vcvt.s32.f32 %v1158
    %v1223 = vcvt.s32.f32 %v1159
    %v1224 = vcvt.s32.f32 %v1160
    %v1225 = vcvt.s32.f32 %v1161
    %v1226 = vcvt.s32.f32 %v1162
    %v1227 = vcvt.s32.f32 %v1163
    %v1228 = vcvt.s32.f32 %v1164
    %v1229 = vcvt.s32.f32 %v1165
    %v1230 = vcvt.s32.f32 %v1166
    %v1231 = vcvt.s32.f32 %v1167
    %v1232 = vcvt.s32.f32 %v1168
    %v1233 = vadd.f32 %v971, %v1169
    %v1234 = vadd.f32 %v972, %v1170
    %v1235 = vadd.f32 %v973, %v1171
    %v1236 = vadd.f32 %v974, %v1172
    %v1237 = vadd.f32 %v975, %v1173
    %v1238 = vadd.f32 %v976, %v1174
    %v1239 = vadd.f32 %v977, %v1175
    %v1240 = vadd.f32 %v978, %v1176
    %v1241 = vadd.f32 %v979, %v1177
    %v1242 = vadd.f32 %v980, %v1178
    %v1243 = vadd.f32 %v981, %v1179
    %v1244 = vadd.f32 %v982, %v1180
    %v1245 = vadd.f32 %v983, %v1181
    %v1246 = vadd.f32 %v984, %v1182
    %v1247 = vadd.f32 %v985, %v1183
    %v1248 = vadd.f32 %v986, %v1184
    %v1249 = vadd.f32 %v987, %v1185
    %v1250 = vadd.f32 %v988, %v1186
    %v1251 = vadd.f32 %v989, %v1187
    %v1252 = vadd.f32 %v990, %v1188
    %v1253 = vadd.f32 %v991, %v1189
    %v1254 = vadd.f32 %v992, %v1190
    %v1255 = vadd.f32 %v993, %v1191
    %v1256 = vadd.f32 %v994, %v1192
    %v1257 = vadd.f32 %v995, %v1193
    %v1258 = vadd.f32 %v996, %v1194
    %v1259 = vadd.f32 %v997, %v1195
    %v1260 = vadd.f32 %v998, %v1196
    %v1261 = vadd.f32 %v999, %v1197
    %v1262 = vadd.f32 %v1000, %v1198
    %v1263 = vadd.f32 %v1001, %v1199
    %v1264 = vadd.f32 %v1002, %v1200
    %v1265 = vadd.f32 %v1003, %v1201
    %v1266 = vadd.f32 %v1004, %v1202
    %v1267 = vadd.f32 %v1005, %v1203
    %v1268 = vadd.f32 %v1006, %v1204
    %v1269 = vadd.f32 %v1007, %v1205
    %v1270 = vadd.f32 %v1008, %v1206
    %v1271 = vadd.f32 %v1009, %v1207
    %v1272 = vadd.f32 %v1010, %v1208
    %v1273 = vadd.f32 %v1011, %v1209
    %v1274 = vadd.f32 %v1012, %v1210
    %v1275 = vadd.f32 %v1013, %v1211
    %v1276 = vadd.f32 %v1014, %v1212
    %v1277 = vadd.f32 %v1015, %v1213
    %v1278 = vadd.f32 %v1016, %v1214
    %v1279 = vadd.f32 %v1017, %v1215
    %v1280 = vadd.f32 %v1018, %v1216
    %v1281 = vadd.f32 %v1019, %v1217
    %v1282 = vadd.f32 %v1020, %v1218
    %v1283 = vadd.f32 %v1021, %v1219
    %v1284 = vadd.f32 %v1022, %v1220
    %v1285 = vadd.f32 %v1023, %v1221
    %v1286 = vadd.f32 %v1024, %v1222
    %v1287 = vadd.f32 %v1025, %v1223
    %v1288 = vadd.f32 %v1026, %v1224
    %v1289 = vadd.f32 %v1027, %v1225
    %v1290 = vadd.f32 %v1028, %v1226
    %v1291 = vadd.f32 %v1029, %v1227
    %v1292 = vadd.f32 %v1030, %v1228
    %v1293 = vadd.f32 %v1031, %v1229
    %v1294 = vadd.f32 %v1032, %v1230
    %v1295 = vadd.f32 %v1033, %v1231
    %v1296 = vadd.f32 %v1034, %v1232
    %1297 = vmatprep.subr.mxu0 0.0
    %1298 = vmatpush1.msra.mxu0 %v1248
    %1299 = vmatprep.subr.mxu0 0.0
    %1300 = vmatpush1.msra.mxu0 %v1247
    %1301 = vmatprep.subr.mxu0 0.0
    %1302 = vmatpush1.msra.mxu0 %v1246
    %1303 = vmatprep.subr.mxu0 0.0
    %1304 = vmatpush1.msra.mxu0 %v1245
    %1305 = vmatprep.subr.mxu0 0.0
    %1306 = vmatpush1.msra.mxu0 %v1244
    %1307 = vmatprep.subr.mxu0 0.0
    %1308 = vmatpush1.msra.mxu0 %v1243
    %1309 = vmatprep.subr.mxu0 0.0
    %1310 = vmatpush1.msra.mxu0 %v1242
    %1311 = vmatprep.subr.mxu0 0.0
    %1312 = vmatpush1.msra.mxu0 %v1241
    %1313 = vmatprep.subr.mxu0 0.0
    %1314 = vmatpush1.msra.mxu0 %v1240
    %1315 = vmatprep.subr.mxu0 0.0
    %1316 = vmatpush1.msra.mxu0 %v1239
    %1317 = vmatprep.subr.mxu0 0.0
    %1318 = vmatpush1.msra.mxu0 %v1238
    %1319 = vmatprep.subr.mxu0 0.0
    %1320 = vmatpush1.msra.mxu0 %v1237
    %1321 = vmatprep.subr.mxu0 0.0
    %1322 = vmatpush1.msra.mxu0 %v1236
    %1323 = vmatprep.subr.mxu0 0.0
    %1324 = vmatpush1.msra.mxu0 %v1235
    %1325 = vmatprep.subr.mxu0 0.0
    %1326 = vmatpush1.msra.mxu0 %v1234
    %1327 = vmatprep.subr.mxu0 0.0
    %1328 = vmatpush1.msra.mxu0 %v1233
    %1329 = vmatprep.subr.mxu0 0.0
    %1330 = vmatpush2.msra.mxu0 %v1264
    %1331 = vmatprep.subr.mxu0 0.0
    %1332 = vmatpush2.msra.mxu0 %v1263
    %1333 = vmatprep.subr.mxu0 0.0
    %1334 = vmatpush2.msra.mxu0 %v1262
    %1335 = vmatprep.subr.mxu0 0.0
    %1336 = vmatpush2.msra.mxu0 %v1261
    %1337 = vmatprep.subr.mxu0 0.0
    %1338 = vmatpush2.msra.mxu0 %v1260
    %1339 = vmatprep.subr.mxu0 0.0
    %1340 = vmatpush2.msra.mxu0 %v1259
    %1341 = vmatprep.subr.mxu0 0.0
    %1342 = vmatpush2.msra.mxu0 %v1258
    %1343 = vmatprep.subr.mxu0 0.0
    %1344 = vmatpush2.msra.mxu0 %v1257
    %1345 = vmatprep.subr.mxu0 0.0
    %1346 = vmatpush2.msra.mxu0 %v1256
    %1347 = vmatprep.subr.mxu0 0.0
    %1348 = vmatpush2.msra.mxu0 %v1255
    %1349 = vmatprep.subr.mxu0 0.0
    %1350 = vmatpush2.msra.mxu0 %v1254
    %1351 = vmatprep.subr.mxu0 0.0
    %1352 = vmatpush2.msra.mxu0 %v1253
    %1353 = vmatprep.subr.mxu0 0.0
    %1354 = vmatpush2.msra.mxu0 %v1252
    %1355 = vmatprep.subr.mxu0 0.0
    %1356 = vmatpush2.msra.mxu0 %v1251
    %1357 = vmatprep.subr.mxu0 0.0
    %1358 = vmatpush2.msra.mxu0 %v1250
    %1359 = vmatprep.subr.mxu0 0.0
    %1360 = vmatpush2.msra.mxu0 %v1249
    %1361 = vmatprep.mubr.f32.mxu0 %v630
    %1362 = vmatmul.mubr.f32.gmra.mxu0 %v629
    %v1363 = vpop.f32.mrf.mxu0
    %v1364 = vadd.f32 0.0, %v1363
    %v1365 = vpop.f32.mrf.mxu0
    %1366 = vdwg.mxu0
    %1367 = vmatprep.subr.mxu0 0.0
    %1368 = vmatpush1.msra.mxu0 %v1280
    %1369 = vmatprep.subr.mxu0 0.0
    %1370 = vmatpush1.msra.mxu0 %v1279
    %1371 = vmatprep.subr.mxu0 0.0
    %1372 = vmatpush1.msra.mxu0 %v1278
    %1373 = vmatprep.subr.mxu0 0.0
    %1374 = vmatpush1.msra.mxu0 %v1277
    %1375 = vmatprep.subr.mxu0 0.0
    %1376 = vmatpush1.msra.mxu0 %v1276
    %1377 = vmatprep.subr.mxu0 0.0
    %1378 = vmatpush1.msra.mxu0 %v1275
    %1379 = vmatprep.subr.mxu0 0.0
    %1380 = vmatpush1.msra.mxu0 %v1274
    %1381 = vmatprep.subr.mxu0 0.0
    %1382 = vmatpush1.msra.mxu0 %v1273
    %1383 = vmatprep.subr.mxu0 0.0
    %1384 = vmatpush1.msra.mxu0 %v1272
    %1385 = vmatprep.subr.mxu0 0.0
    %1386 = vmatpush1.msra.mxu0 %v1271
    %1387 = vmatprep.subr.mxu0 0.0
    %1388 = vmatpush1.msra.mxu0 %v1270
    %1389 = vmatprep.subr.mxu0 0.0
    %1390 = vmatpush1.msra.mxu0 %v1269
    %1391 = vmatprep.subr.mxu0 0.0
    %1392 = vmatpush1.msra.mxu0 %v1268
    %1393 = vmatprep.subr.mxu0 0.0
    %1394 = vmatpush1.msra.mxu0 %v1267
    %1395 = vmatprep.subr.mxu0 0.0
    %1396 = vmatpush1.msra.mxu0 %v1266
    %1397 = vmatprep.subr.mxu0 0.0
    %1398 = vmatpush1.msra.mxu0 %v1265
    %1399 = vmatprep.subr.mxu0 0.0
    %1400 = vmatpush2.msra.mxu0 %v1296
    %1401 = vmatprep.subr.mxu0 0.0
    %1402 = vmatpush2.msra.mxu0 %v1295
    %1403 = vmatprep.subr.mxu0 0.0
    %1404 = vmatpush2.msra.mxu0 %v1294
    %1405 = vmatprep.subr.mxu0 0.0
    %1406 = vmatpush2.msra.mxu0 %v1293
    %1407 = vmatprep.subr.mxu0 0.0
    %1408 = vmatpush2.msra.mxu0 %v1292
    %1409 = vmatprep.subr.mxu0 0.0
    %1410 = vmatpush2.msra.mxu0 %v1291
    %1411 = vmatprep.subr.mxu0 0.0
    %1412 = vmatpush2.msra.mxu0 %v1290
    %1413 = vmatprep.subr.mxu0 0.0
    %1414 = vmatpush2.msra.mxu0 %v1289
    %1415 = vmatprep.subr.mxu0 0.0
    %1416 = vmatpush2.msra.mxu0 %v1288
    %1417 = vmatprep.subr.mxu0 0.0
    %1418 = vmatpush2.msra.mxu0 %v1287
    %1419 = vmatprep.subr.mxu0 0.0
    %1420 = vmatpush2.msra.mxu0 %v1286
    %1421 = vmatprep.subr.mxu0 0.0
    %1422 = vmatpush2.msra.mxu0 %v1285
    %1423 = vmatprep.subr.mxu0 0.0
    %1424 = vmatpush2.msra.mxu0 %v1284
    %1425 = vmatprep.subr.mxu0 0.0
    %1426 = vmatpush2.msra.mxu0 %v1283
    %1427 = vmatprep.subr.mxu0 0.0
    %1428 = vmatpush2.msra.mxu0 %v1282
    %1429 = vmatprep.subr.mxu0 0.0
    %1430 = vmatpush2.msra.mxu0 %v1281
    %1431 = vmatprep.mubr.f32.mxu0 %v632
    %1432 = vmatmul.mubr.f32.gmra.mxu0 %v631
    %v1433 = vpop.f32.mrf.mxu0
    %v1434 = vadd.f32 %v1364, %v1433
    %v1435 = vpop.f32.mrf.mxu0
    %1436 = vdwg.mxu0
    %s1437 = scalar_lea.vmem [#allocation2], 4
    %v1438 = vld [vmem:[%s1437] sm:$0x1]
    %v1439 = vlaneseq
    %v1440 = vshrl.u32 %v1439, 7
    %v1441 = vsub.s32 0, %v1440
    %v1442 = vrot.slane %v1438, %v1441
    %vm1443 = vcmp.eq.s32.totalorder %v42, %v1442
    %vm1444 = vcmp.eq.s32.totalorder %v43, %v1442
    %vm1445 = vcmp.eq.s32.totalorder %v44, %v1442
    %vm1446 = vcmp.eq.s32.totalorder %v45, %v1442
    %vm1447 = vcmp.eq.s32.totalorder %v46, %v1442
    %vm1448 = vcmp.eq.s32.totalorder %v47, %v1442
    %vm1449 = vcmp.eq.s32.totalorder %v48, %v1442
    %vm1450 = vcmp.eq.s32.totalorder %v49, %v1442
    %vm1451 = vcmp.eq.s32.totalorder %v50, %v1442
    %vm1452 = vcmp.eq.s32.totalorder %v51, %v1442
    %vm1453 = vcmp.eq.s32.totalorder %v52, %v1442
    %vm1454 = vcmp.eq.s32.totalorder %v53, %v1442
    %vm1455 = vcmp.eq.s32.totalorder %v54, %v1442
    %vm1456 = vcmp.eq.s32.totalorder %v55, %v1442
    %vm1457 = vcmp.eq.s32.totalorder %v56, %v1442
    %vm1458 = vcmp.eq.s32.totalorder %v57, %v1442
    %vm1459 = vcmp.eq.s32.totalorder %v58, %v1442
    %vm1460 = vcmp.eq.s32.totalorder %v59, %v1442
    %vm1461 = vcmp.eq.s32.totalorder %v60, %v1442
    %vm1462 = vcmp.eq.s32.totalorder %v61, %v1442
    %vm1463 = vcmp.eq.s32.totalorder %v62, %v1442
    %vm1464 = vcmp.eq.s32.totalorder %v63, %v1442
    %vm1465 = vcmp.eq.s32.totalorder %v64, %v1442
    %vm1466 = vcmp.eq.s32.totalorder %v65, %v1442
    %vm1467 = vcmp.eq.s32.totalorder %v66, %v1442
    %vm1468 = vcmp.eq.s32.totalorder %v67, %v1442
    %vm1469 = vcmp.eq.s32.totalorder %v68, %v1442
    %vm1470 = vcmp.eq.s32.totalorder %v69, %v1442
    %vm1471 = vcmp.eq.s32.totalorder %v70, %v1442
    %vm1472 = vcmp.eq.s32.totalorder %v71, %v1442
    %vm1473 = vcmp.eq.s32.totalorder %v72, %v1442
    %vm1474 = vcmp.eq.s32.totalorder %v73, %v1442
    %vm1475 = vcmp.eq.s32.totalorder %v74, %v1442
    %vm1476 = vcmp.eq.s32.totalorder %v75, %v1442
    %vm1477 = vcmp.eq.s32.totalorder %v76, %v1442
    %vm1478 = vcmp.eq.s32.totalorder %v77, %v1442
    %vm1479 = vcmp.eq.s32.totalorder %v78, %v1442
    %vm1480 = vcmp.eq.s32.totalorder %v79, %v1442
    %vm1481 = vcmp.eq.s32.totalorder %v80, %v1442
    %vm1482 = vcmp.eq.s32.totalorder %v81, %v1442
    %vm1483 = vcmp.eq.s32.totalorder %v82, %v1442
    %vm1484 = vcmp.eq.s32.totalorder %v83, %v1442
    %vm1485 = vcmp.eq.s32.totalorder %v84, %v1442
    %vm1486 = vcmp.eq.s32.totalorder %v85, %v1442
    %vm1487 = vcmp.eq.s32.totalorder %v86, %v1442
    %vm1488 = vcmp.eq.s32.totalorder %v87, %v1442
    %vm1489 = vcmp.eq.s32.totalorder %v88, %v1442
    %vm1490 = vcmp.eq.s32.totalorder %v89, %v1442
    %vm1491 = vcmp.eq.s32.totalorder %v90, %v1442
    %vm1492 = vcmp.eq.s32.totalorder %v91, %v1442
    %vm1493 = vcmp.eq.s32.totalorder %v92, %v1442
    %vm1494 = vcmp.eq.s32.totalorder %v93, %v1442
    %vm1495 = vcmp.eq.s32.totalorder %v94, %v1442
    %vm1496 = vcmp.eq.s32.totalorder %v95, %v1442
    %vm1497 = vcmp.eq.s32.totalorder %v96, %v1442
    %vm1498 = vcmp.eq.s32.totalorder %v97, %v1442
    %vm1499 = vcmp.eq.s32.totalorder %v98, %v1442
    %vm1500 = vcmp.eq.s32.totalorder %v99, %v1442
    %vm1501 = vcmp.eq.s32.totalorder %v100, %v1442
    %vm1502 = vcmp.eq.s32.totalorder %v101, %v1442
    %vm1503 = vcmp.eq.s32.totalorder %v102, %v1442
    %vm1504 = vcmp.eq.s32.totalorder %v103, %v1442
    %vm1505 = vcmp.eq.s32.totalorder %v104, %v1442
    %vm1506 = vcmp.eq.s32.totalorder %v105, %v1442
    %v1507 = vsel %vm1443, 1, 0
    %v1508 = vsel %vm1444, 1, 0
    %v1509 = vsel %vm1445, 1, 0
    %v1510 = vsel %vm1446, 1, 0
    %v1511 = vsel %vm1447, 1, 0
    %v1512 = vsel %vm1448, 1, 0
    %v1513 = vsel %vm1449, 1, 0
    %v1514 = vsel %vm1450, 1, 0
    %v1515 = vsel %vm1451, 1, 0
    %v1516 = vsel %vm1452, 1, 0
    %v1517 = vsel %vm1453, 1, 0
    %v1518 = vsel %vm1454, 1, 0
    %v1519 = vsel %vm1455, 1, 0
    %v1520 = vsel %vm1456, 1, 0
    %v1521 = vsel %vm1457, 1, 0
    %v1522 = vsel %vm1458, 1, 0
    %v1523 = vsel %vm1459, 1, 0
    %v1524 = vsel %vm1460, 1, 0
    %v1525 = vsel %vm1461, 1, 0
    %v1526 = vsel %vm1462, 1, 0
    %v1527 = vsel %vm1463, 1, 0
    %v1528 = vsel %vm1464, 1, 0
    %v1529 = vsel %vm1465, 1, 0
    %v1530 = vsel %vm1466, 1, 0
    %v1531 = vsel %vm1467, 1, 0
    %v1532 = vsel %vm1468, 1, 0
    %v1533 = vsel %vm1469, 1, 0
    %v1534 = vsel %vm1470, 1, 0
    %v1535 = vsel %vm1471, 1, 0
    %v1536 = vsel %vm1472, 1, 0
    %v1537 = vsel %vm1473, 1, 0
    %v1538 = vsel %vm1474, 1, 0
    %v1539 = vsel %vm1475, 1, 0
    %v1540 = vsel %vm1476, 1, 0
    %v1541 = vsel %vm1477, 1, 0
    %v1542 = vsel %vm1478, 1, 0
    %v1543 = vsel %vm1479, 1, 0
    %v1544 = vsel %vm1480, 1, 0
    %v1545 = vsel %vm1481, 1, 0
    %v1546 = vsel %vm1482, 1, 0
    %v1547 = vsel %vm1483, 1, 0
    %v1548 = vsel %vm1484, 1, 0
    %v1549 = vsel %vm1485, 1, 0
    %v1550 = vsel %vm1486, 1, 0
    %v1551 = vsel %vm1487, 1, 0
    %v1552 = vsel %vm1488, 1, 0
    %v1553 = vsel %vm1489, 1, 0
    %v1554 = vsel %vm1490, 1, 0
    %v1555 = vsel %vm1491, 1, 0
    %v1556 = vsel %vm1492, 1, 0
    %v1557 = vsel %vm1493, 1, 0
    %v1558 = vsel %vm1494, 1, 0
    %v1559 = vsel %vm1495, 1, 0
    %v1560 = vsel %vm1496, 1, 0
    %v1561 = vsel %vm1497, 1, 0
    %v1562 = vsel %vm1498, 1, 0
    %v1563 = vsel %vm1499, 1, 0
    %v1564 = vsel %vm1500, 1, 0
    %v1565 = vsel %vm1501, 1, 0
    %v1566 = vsel %vm1502, 1, 0
    %v1567 = vsel %vm1503, 1, 0
    %v1568 = vsel %vm1504, 1, 0
    %v1569 = vsel %vm1505, 1, 0
    %v1570 = vsel %vm1506, 1, 0
    %v1571 = vcvt.s32.f32 %v1507
    %v1572 = vcvt.s32.f32 %v1508
    %v1573 = vcvt.s32.f32 %v1509
    %v1574 = vcvt.s32.f32 %v1510
    %v1575 = vcvt.s32.f32 %v1511
    %v1576 = vcvt.s32.f32 %v1512
    %v1577 = vcvt.s32.f32 %v1513
    %v1578 = vcvt.s32.f32 %v1514
    %v1579 = vcvt.s32.f32 %v1515
    %v1580 = vcvt.s32.f32 %v1516
    %v1581 = vcvt.s32.f32 %v1517
    %v1582 = vcvt.s32.f32 %v1518
    %v1583 = vcvt.s32.f32 %v1519
    %v1584 = vcvt.s32.f32 %v1520
    %v1585 = vcvt.s32.f32 %v1521
    %v1586 = vcvt.s32.f32 %v1522
    %v1587 = vcvt.s32.f32 %v1523
    %v1588 = vcvt.s32.f32 %v1524
    %v1589 = vcvt.s32.f32 %v1525
    %v1590 = vcvt.s32.f32 %v1526
    %v1591 = vcvt.s32.f32 %v1527
    %v1592 = vcvt.s32.f32 %v1528
    %v1593 = vcvt.s32.f32 %v1529
    %v1594 = vcvt.s32.f32 %v1530
    %v1595 = vcvt.s32.f32 %v1531
    %v1596 = vcvt.s32.f32 %v1532
    %v1597 = vcvt.s32.f32 %v1533
    %v1598 = vcvt.s32.f32 %v1534
    %v1599 = vcvt.s32.f32 %v1535
    %v1600 = vcvt.s32.f32 %v1536
    %v1601 = vcvt.s32.f32 %v1537
    %v1602 = vcvt.s32.f32 %v1538
    %v1603 = vcvt.s32.f32 %v1539
    %v1604 = vcvt.s32.f32 %v1540
    %v1605 = vcvt.s32.f32 %v1541
    %v1606 = vcvt.s32.f32 %v1542
    %v1607 = vcvt.s32.f32 %v1543
    %v1608 = vcvt.s32.f32 %v1544
    %v1609 = vcvt.s32.f32 %v1545
    %v1610 = vcvt.s32.f32 %v1546
    %v1611 = vcvt.s32.f32 %v1547
    %v1612 = vcvt.s32.f32 %v1548
    %v1613 = vcvt.s32.f32 %v1549
    %v1614 = vcvt.s32.f32 %v1550
    %v1615 = vcvt.s32.f32 %v1551
    %v1616 = vcvt.s32.f32 %v1552
    %v1617 = vcvt.s32.f32 %v1553
    %v1618 = vcvt.s32.f32 %v1554
    %v1619 = vcvt.s32.f32 %v1555
    %v1620 = vcvt.s32.f32 %v1556
    %v1621 = vcvt.s32.f32 %v1557
    %v1622 = vcvt.s32.f32 %v1558
    %v1623 = vcvt.s32.f32 %v1559
    %v1624 = vcvt.s32.f32 %v1560
    %v1625 = vcvt.s32.f32 %v1561
    %v1626 = vcvt.s32.f32 %v1562
    %v1627 = vcvt.s32.f32 %v1563
    %v1628 = vcvt.s32.f32 %v1564
    %v1629 = vcvt.s32.f32 %v1565
    %v1630 = vcvt.s32.f32 %v1566
    %v1631 = vcvt.s32.f32 %v1567
    %v1632 = vcvt.s32.f32 %v1568
    %v1633 = vcvt.s32.f32 %v1569
    %v1634 = vcvt.s32.f32 %v1570
    %v1635 = vadd.f32 %v1571, 0.0
    %v1636 = vadd.f32 %v1572, 0.0
    %v1637 = vadd.f32 %v1573, 0.0
    %v1638 = vadd.f32 %v1574, 0.0
    %v1639 = vadd.f32 %v1575, 0.0
    %v1640 = vadd.f32 %v1576, 0.0
    %v1641 = vadd.f32 %v1577, 0.0
    %v1642 = vadd.f32 %v1578, 0.0
    %v1643 = vadd.f32 %v1579, 0.0
    %v1644 = vadd.f32 %v1580, 0.0
    %v1645 = vadd.f32 %v1581, 0.0
    %v1646 = vadd.f32 %v1582, 0.0
    %v1647 = vadd.f32 %v1583, 0.0
    %v1648 = vadd.f32 %v1584, 0.0
    %v1649 = vadd.f32 %v1585, 0.0
    %v1650 = vadd.f32 %v1586, 0.0
    %v1651 = vadd.f32 %v1587, 0.0
    %v1652 = vadd.f32 %v1588, 0.0
    %v1653 = vadd.f32 %v1589, 0.0
    %v1654 = vadd.f32 %v1590, 0.0
    %v1655 = vadd.f32 %v1591, 0.0
    %v1656 = vadd.f32 %v1592, 0.0
    %v1657 = vadd.f32 %v1593, 0.0
    %v1658 = vadd.f32 %v1594, 0.0
    %v1659 = vadd.f32 %v1595, 0.0
    %v1660 = vadd.f32 %v1596, 0.0
    %v1661 = vadd.f32 %v1597, 0.0
    %v1662 = vadd.f32 %v1598, 0.0
    %v1663 = vadd.f32 %v1599, 0.0
    %v1664 = vadd.f32 %v1600, 0.0
    %v1665 = vadd.f32 %v1601, 0.0
    %v1666 = vadd.f32 %v1602, 0.0
    %v1667 = vadd.f32 %v1603, 0.0
    %v1668 = vadd.f32 %v1604, 0.0
    %v1669 = vadd.f32 %v1605, 0.0
    %v1670 = vadd.f32 %v1606, 0.0
    %v1671 = vadd.f32 %v1607, 0.0
    %v1672 = vadd.f32 %v1608, 0.0
    %v1673 = vadd.f32 %v1609, 0.0
    %v1674 = vadd.f32 %v1610, 0.0
    %v1675 = vadd.f32 %v1611, 0.0
    %v1676 = vadd.f32 %v1612, 0.0
    %v1677 = vadd.f32 %v1613, 0.0
    %v1678 = vadd.f32 %v1614, 0.0
    %v1679 = vadd.f32 %v1615, 0.0
    %v1680 = vadd.f32 %v1616, 0.0
    %v1681 = vadd.f32 %v1617, 0.0
    %v1682 = vadd.f32 %v1618, 0.0
    %v1683 = vadd.f32 %v1619, 0.0
    %v1684 = vadd.f32 %v1620, 0.0
    %v1685 = vadd.f32 %v1621, 0.0
    %v1686 = vadd.f32 %v1622, 0.0
    %v1687 = vadd.f32 %v1623, 0.0
    %v1688 = vadd.f32 %v1624, 0.0
    %v1689 = vadd.f32 %v1625, 0.0
    %v1690 = vadd.f32 %v1626, 0.0
    %v1691 = vadd.f32 %v1627, 0.0
    %v1692 = vadd.f32 %v1628, 0.0
    %v1693 = vadd.f32 %v1629, 0.0
    %v1694 = vadd.f32 %v1630, 0.0
    %v1695 = vadd.f32 %v1631, 0.0
    %v1696 = vadd.f32 %v1632, 0.0
    %v1697 = vadd.f32 %v1633, 0.0
    %v1698 = vadd.f32 %v1634, 0.0
    %v1699 = vld [vmem:[%s1437 + $0x1] sm:$0x1]
    %v1700 = vadd.s32 %v1699, 256
    %v1701 = vlaneseq
    %v1702 = vshrl.u32 %v1701, 7
    %v1703 = vsub.s32 0, %v1702
    %v1704 = vrot.slane %v1700, %v1703
    %vm1705 = vcmp.eq.s32.totalorder %v42, %v1704
    %vm1706 = vcmp.eq.s32.totalorder %v43, %v1704
    %vm1707 = vcmp.eq.s32.totalorder %v44, %v1704
    %vm1708 = vcmp.eq.s32.totalorder %v45, %v1704
    %vm1709 = vcmp.eq.s32.totalorder %v46, %v1704
    %vm1710 = vcmp.eq.s32.totalorder %v47, %v1704
    %vm1711 = vcmp.eq.s32.totalorder %v48, %v1704
    %vm1712 = vcmp.eq.s32.totalorder %v49, %v1704
    %vm1713 = vcmp.eq.s32.totalorder %v50, %v1704
    %vm1714 = vcmp.eq.s32.totalorder %v51, %v1704
    %vm1715 = vcmp.eq.s32.totalorder %v52, %v1704
    %vm1716 = vcmp.eq.s32.totalorder %v53, %v1704
    %vm1717 = vcmp.eq.s32.totalorder %v54, %v1704
    %vm1718 = vcmp.eq.s32.totalorder %v55, %v1704
    %vm1719 = vcmp.eq.s32.totalorder %v56, %v1704
    %vm1720 = vcmp.eq.s32.totalorder %v57, %v1704
    %vm1721 = vcmp.eq.s32.totalorder %v58, %v1704
    %vm1722 = vcmp.eq.s32.totalorder %v59, %v1704
    %vm1723 = vcmp.eq.s32.totalorder %v60, %v1704
    %vm1724 = vcmp.eq.s32.totalorder %v61, %v1704
    %vm1725 = vcmp.eq.s32.totalorder %v62, %v1704
    %vm1726 = vcmp.eq.s32.totalorder %v63, %v1704
    %vm1727 = vcmp.eq.s32.totalorder %v64, %v1704
    %vm1728 = vcmp.eq.s32.totalorder %v65, %v1704
    %vm1729 = vcmp.eq.s32.totalorder %v66, %v1704
    %vm1730 = vcmp.eq.s32.totalorder %v67, %v1704
    %vm1731 = vcmp.eq.s32.totalorder %v68, %v1704
    %vm1732 = vcmp.eq.s32.totalorder %v69, %v1704
    %vm1733 = vcmp.eq.s32.totalorder %v70, %v1704
    %vm1734 = vcmp.eq.s32.totalorder %v71, %v1704
    %vm1735 = vcmp.eq.s32.totalorder %v72, %v1704
    %vm1736 = vcmp.eq.s32.totalorder %v73, %v1704
    %vm1737 = vcmp.eq.s32.totalorder %v74, %v1704
    %vm1738 = vcmp.eq.s32.totalorder %v75, %v1704
    %vm1739 = vcmp.eq.s32.totalorder %v76, %v1704
    %vm1740 = vcmp.eq.s32.totalorder %v77, %v1704
    %vm1741 = vcmp.eq.s32.totalorder %v78, %v1704
    %vm1742 = vcmp.eq.s32.totalorder %v79, %v1704
    %vm1743 = vcmp.eq.s32.totalorder %v80, %v1704
    %vm1744 = vcmp.eq.s32.totalorder %v81, %v1704
    %vm1745 = vcmp.eq.s32.totalorder %v82, %v1704
    %vm1746 = vcmp.eq.s32.totalorder %v83, %v1704
    %vm1747 = vcmp.eq.s32.totalorder %v84, %v1704
    %vm1748 = vcmp.eq.s32.totalorder %v85, %v1704
    %vm1749 = vcmp.eq.s32.totalorder %v86, %v1704
    %vm1750 = vcmp.eq.s32.totalorder %v87, %v1704
    %vm1751 = vcmp.eq.s32.totalorder %v88, %v1704
    %vm1752 = vcmp.eq.s32.totalorder %v89, %v1704
    %vm1753 = vcmp.eq.s32.totalorder %v90, %v1704
    %vm1754 = vcmp.eq.s32.totalorder %v91, %v1704
    %vm1755 = vcmp.eq.s32.totalorder %v92, %v1704
    %vm1756 = vcmp.eq.s32.totalorder %v93, %v1704
    %vm1757 = vcmp.eq.s32.totalorder %v94, %v1704
    %vm1758 = vcmp.eq.s32.totalorder %v95, %v1704
    %vm1759 = vcmp.eq.s32.totalorder %v96, %v1704
    %vm1760 = vcmp.eq.s32.totalorder %v97, %v1704
    %vm1761 = vcmp.eq.s32.totalorder %v98, %v1704
    %vm1762 = vcmp.eq.s32.totalorder %v99, %v1704
    %vm1763 = vcmp.eq.s32.totalorder %v100, %v1704
    %vm1764 = vcmp.eq.s32.totalorder %v101, %v1704
    %vm1765 = vcmp.eq.s32.totalorder %v102, %v1704
    %vm1766 = vcmp.eq.s32.totalorder %v103, %v1704
    %vm1767 = vcmp.eq.s32.totalorder %v104, %v1704
    %vm1768 = vcmp.eq.s32.totalorder %v105, %v1704
    %v1769 = vsel %vm1705, 1, 0
    %v1770 = vsel %vm1706, 1, 0
    %v1771 = vsel %vm1707, 1, 0
    %v1772 = vsel %vm1708, 1, 0
    %v1773 = vsel %vm1709, 1, 0
    %v1774 = vsel %vm1710, 1, 0
    %v1775 = vsel %vm1711, 1, 0
    %v1776 = vsel %vm1712, 1, 0
    %v1777 = vsel %vm1713, 1, 0
    %v1778 = vsel %vm1714, 1, 0
    %v1779 = vsel %vm1715, 1, 0
    %v1780 = vsel %vm1716, 1, 0
    %v1781 = vsel %vm1717, 1, 0
    %v1782 = vsel %vm1718, 1, 0
    %v1783 = vsel %vm1719, 1, 0
    %v1784 = vsel %vm1720, 1, 0
    %v1785 = vsel %vm1721, 1, 0
    %v1786 = vsel %vm1722, 1, 0
    %v1787 = vsel %vm1723, 1, 0
    %v1788 = vsel %vm1724, 1, 0
    %v1789 = vsel %vm1725, 1, 0
    %v1790 = vsel %vm1726, 1, 0
    %v1791 = vsel %vm1727, 1, 0
    %v1792 = vsel %vm1728, 1, 0
    %v1793 = vsel %vm1729, 1, 0
    %v1794 = vsel %vm1730, 1, 0
    %v1795 = vsel %vm1731, 1, 0
    %v1796 = vsel %vm1732, 1, 0
    %v1797 = vsel %vm1733, 1, 0
    %v1798 = vsel %vm1734, 1, 0
    %v1799 = vsel %vm1735, 1, 0
    %v1800 = vsel %vm1736, 1, 0
    %v1801 = vsel %vm1737, 1, 0
    %v1802 = vsel %vm1738, 1, 0
    %v1803 = vsel %vm1739, 1, 0
    %v1804 = vsel %vm1740, 1, 0
    %v1805 = vsel %vm1741, 1, 0
    %v1806 = vsel %vm1742, 1, 0
    %v1807 = vsel %vm1743, 1, 0
    %v1808 = vsel %vm1744, 1, 0
    %v1809 = vsel %vm1745, 1, 0
    %v1810 = vsel %vm1746, 1, 0
    %v1811 = vsel %vm1747, 1, 0
    %v1812 = vsel %vm1748, 1, 0
    %v1813 = vsel %vm1749, 1, 0
    %v1814 = vsel %vm1750, 1, 0
    %v1815 = vsel %vm1751, 1, 0
    %v1816 = vsel %vm1752, 1, 0
    %v1817 = vsel %vm1753, 1, 0
    %v1818 = vsel %vm1754, 1, 0
    %v1819 = vsel %vm1755, 1, 0
    %v1820 = vsel %vm1756, 1, 0
    %v1821 = vsel %vm1757, 1, 0
    %v1822 = vsel %vm1758, 1, 0
    %v1823 = vsel %vm1759, 1, 0
    %v1824 = vsel %vm1760, 1, 0
    %v1825 = vsel %vm1761, 1, 0
    %v1826 = vsel %vm1762, 1, 0
    %v1827 = vsel %vm1763, 1, 0
    %v1828 = vsel %vm1764, 1, 0
    %v1829 = vsel %vm1765, 1, 0
    %v1830 = vsel %vm1766, 1, 0
    %v1831 = vsel %vm1767, 1, 0
    %v1832 = vsel %vm1768, 1, 0
    %v1833 = vcvt.s32.f32 %v1769
    %v1834 = vcvt.s32.f32 %v1770
    %v1835 = vcvt.s32.f32 %v1771
    %v1836 = vcvt.s32.f32 %v1772
    %v1837 = vcvt.s32.f32 %v1773
    %v1838 = vcvt.s32.f32 %v1774
    %v1839 = vcvt.s32.f32 %v1775
    %v1840 = vcvt.s32.f32 %v1776
    %v1841 = vcvt.s32.f32 %v1777
    %v1842 = vcvt.s32.f32 %v1778
    %v1843 = vcvt.s32.f32 %v1779
    %v1844 = vcvt.s32.f32 %v1780
    %v1845 = vcvt.s32.f32 %v1781
    %v1846 = vcvt.s32.f32 %v1782
    %v1847 = vcvt.s32.f32 %v1783
    %v1848 = vcvt.s32.f32 %v1784
    %v1849 = vcvt.s32.f32 %v1785
    %v1850 = vcvt.s32.f32 %v1786
    %v1851 = vcvt.s32.f32 %v1787
    %v1852 = vcvt.s32.f32 %v1788
    %v1853 = vcvt.s32.f32 %v1789
    %v1854 = vcvt.s32.f32 %v1790
    %v1855 = vcvt.s32.f32 %v1791
    %v1856 = vcvt.s32.f32 %v1792
    %v1857 = vcvt.s32.f32 %v1793
    %v1858 = vcvt.s32.f32 %v1794
    %v1859 = vcvt.s32.f32 %v1795
    %v1860 = vcvt.s32.f32 %v1796
    %v1861 = vcvt.s32.f32 %v1797
    %v1862 = vcvt.s32.f32 %v1798
    %v1863 = vcvt.s32.f32 %v1799
    %v1864 = vcvt.s32.f32 %v1800
    %v1865 = vcvt.s32.f32 %v1801
    %v1866 = vcvt.s32.f32 %v1802
    %v1867 = vcvt.s32.f32 %v1803
    %v1868 = vcvt.s32.f32 %v1804
    %v1869 = vcvt.s32.f32 %v1805
    %v1870 = vcvt.s32.f32 %v1806
    %v1871 = vcvt.s32.f32 %v1807
    %v1872 = vcvt.s32.f32 %v1808
    %v1873 = vcvt.s32.f32 %v1809
    %v1874 = vcvt.s32.f32 %v1810
    %v1875 = vcvt.s32.f32 %v1811
    %v1876 = vcvt.s32.f32 %v1812
    %v1877 = vcvt.s32.f32 %v1813
    %v1878 = vcvt.s32.f32 %v1814
    %v1879 = vcvt.s32.f32 %v1815
    %v1880 = vcvt.s32.f32 %v1816
    %v1881 = vcvt.s32.f32 %v1817
    %v1882 = vcvt.s32.f32 %v1818
    %v1883 = vcvt.s32.f32 %v1819
    %v1884 = vcvt.s32.f32 %v1820
    %v1885 = vcvt.s32.f32 %v1821
    %v1886 = vcvt.s32.f32 %v1822
    %v1887 = vcvt.s32.f32 %v1823
    %v1888 = vcvt.s32.f32 %v1824
    %v1889 = vcvt.s32.f32 %v1825
    %v1890 = vcvt.s32.f32 %v1826
    %v1891 = vcvt.s32.f32 %v1827
    %v1892 = vcvt.s32.f32 %v1828
    %v1893 = vcvt.s32.f32 %v1829
    %v1894 = vcvt.s32.f32 %v1830
    %v1895 = vcvt.s32.f32 %v1831
    %v1896 = vcvt.s32.f32 %v1832
    %v1897 = vadd.f32 %v1635, %v1833
    %v1898 = vadd.f32 %v1636, %v1834
    %v1899 = vadd.f32 %v1637, %v1835
    %v1900 = vadd.f32 %v1638, %v1836
    %v1901 = vadd.f32 %v1639, %v1837
    %v1902 = vadd.f32 %v1640, %v1838
    %v1903 = vadd.f32 %v1641, %v1839
    %v1904 = vadd.f32 %v1642, %v1840
    %v1905 = vadd.f32 %v1643, %v1841
    %v1906 = vadd.f32 %v1644, %v1842
    %v1907 = vadd.f32 %v1645, %v1843
    %v1908 = vadd.f32 %v1646, %v1844
    %v1909 = vadd.f32 %v1647, %v1845
    %v1910 = vadd.f32 %v1648, %v1846
    %v1911 = vadd.f32 %v1649, %v1847
    %v1912 = vadd.f32 %v1650, %v1848
    %v1913 = vadd.f32 %v1651, %v1849
    %v1914 = vadd.f32 %v1652, %v1850
    %v1915 = vadd.f32 %v1653, %v1851
    %v1916 = vadd.f32 %v1654, %v1852
    %v1917 = vadd.f32 %v1655, %v1853
    %v1918 = vadd.f32 %v1656, %v1854
    %v1919 = vadd.f32 %v1657, %v1855
    %v1920 = vadd.f32 %v1658, %v1856
    %v1921 = vadd.f32 %v1659, %v1857
    %v1922 = vadd.f32 %v1660, %v1858
    %v1923 = vadd.f32 %v1661, %v1859
    %v1924 = vadd.f32 %v1662, %v1860
    %v1925 = vadd.f32 %v1663, %v1861
    %v1926 = vadd.f32 %v1664, %v1862
    %v1927 = vadd.f32 %v1665, %v1863
    %v1928 = vadd.f32 %v1666, %v1864
    %v1929 = vadd.f32 %v1667, %v1865
    %v1930 = vadd.f32 %v1668, %v1866
    %v1931 = vadd.f32 %v1669, %v1867
    %v1932 = vadd.f32 %v1670, %v1868
    %v1933 = vadd.f32 %v1671, %v1869
    %v1934 = vadd.f32 %v1672, %v1870
    %v1935 = vadd.f32 %v1673, %v1871
    %v1936 = vadd.f32 %v1674, %v1872
    %v1937 = vadd.f32 %v1675, %v1873
    %v1938 = vadd.f32 %v1676, %v1874
    %v1939 = vadd.f32 %v1677, %v1875
    %v1940 = vadd.f32 %v1678, %v1876
    %v1941 = vadd.f32 %v1679, %v1877
    %v1942 = vadd.f32 %v1680, %v1878
    %v1943 = vadd.f32 %v1681, %v1879
    %v1944 = vadd.f32 %v1682, %v1880
    %v1945 = vadd.f32 %v1683, %v1881
    %v1946 = vadd.f32 %v1684, %v1882
    %v1947 = vadd.f32 %v1685, %v1883
    %v1948 = vadd.f32 %v1686, %v1884
    %v1949 = vadd.f32 %v1687, %v1885
    %v1950 = vadd.f32 %v1688, %v1886
    %v1951 = vadd.f32 %v1689, %v1887
    %v1952 = vadd.f32 %v1690, %v1888
    %v1953 = vadd.f32 %v1691, %v1889
    %v1954 = vadd.f32 %v1692, %v1890
    %v1955 = vadd.f32 %v1693, %v1891
    %v1956 = vadd.f32 %v1694, %v1892
    %v1957 = vadd.f32 %v1695, %v1893
    %v1958 = vadd.f32 %v1696, %v1894
    %v1959 = vadd.f32 %v1697, %v1895
    %v1960 = vadd.f32 %v1698, %v1896
    %1961 = vmatprep.subr.mxu0 0.0
    %1962 = vmatpush1.msra.mxu0 %v1912
    %1963 = vmatprep.subr.mxu0 0.0
    %1964 = vmatpush1.msra.mxu0 %v1911
    %1965 = vmatprep.subr.mxu0 0.0
    %1966 = vmatpush1.msra.mxu0 %v1910
    %1967 = vmatprep.subr.mxu0 0.0
    %1968 = vmatpush1.msra.mxu0 %v1909
    %1969 = vmatprep.subr.mxu0 0.0
    %1970 = vmatpush1.msra.mxu0 %v1908
    %1971 = vmatprep.subr.mxu0 0.0
    %1972 = vmatpush1.msra.mxu0 %v1907
    %1973 = vmatprep.subr.mxu0 0.0
    %1974 = vmatpush1.msra.mxu0 %v1906
    %1975 = vmatprep.subr.mxu0 0.0
    %1976 = vmatpush1.msra.mxu0 %v1905
    %1977 = vmatprep.subr.mxu0 0.0
    %1978 = vmatpush1.msra.mxu0 %v1904
    %1979 = vmatprep.subr.mxu0 0.0
    %1980 = vmatpush1.msra.mxu0 %v1903
    %1981 = vmatprep.subr.mxu0 0.0
    %1982 = vmatpush1.msra.mxu0 %v1902
    %1983 = vmatprep.subr.mxu0 0.0
    %1984 = vmatpush1.msra.mxu0 %v1901
    %1985 = vmatprep.subr.mxu0 0.0
    %1986 = vmatpush1.msra.mxu0 %v1900
    %1987 = vmatprep.subr.mxu0 0.0
    %1988 = vmatpush1.msra.mxu0 %v1899
    %1989 = vmatprep.subr.mxu0 0.0
    %1990 = vmatpush1.msra.mxu0 %v1898
    %1991 = vmatprep.subr.mxu0 0.0
    %1992 = vmatpush1.msra.mxu0 %v1897
    %1993 = vmatprep.subr.mxu0 0.0
    %1994 = vmatpush2.msra.mxu0 %v1928
    %1995 = vmatprep.subr.mxu0 0.0
    %1996 = vmatpush2.msra.mxu0 %v1927
    %1997 = vmatprep.subr.mxu0 0.0
    %1998 = vmatpush2.msra.mxu0 %v1926
    %1999 = vmatprep.subr.mxu0 0.0
    %2000 = vmatpush2.msra.mxu0 %v1925
    %2001 = vmatprep.subr.mxu0 0.0
    %2002 = vmatpush2.msra.mxu0 %v1924
    %2003 = vmatprep.subr.mxu0 0.0
    %2004 = vmatpush2.msra.mxu0 %v1923
    %2005 = vmatprep.subr.mxu0 0.0
    %2006 = vmatpush2.msra.mxu0 %v1922
    %2007 = vmatprep.subr.mxu0 0.0
    %2008 = vmatpush2.msra.mxu0 %v1921
    %2009 = vmatprep.subr.mxu0 0.0
    %2010 = vmatpush2.msra.mxu0 %v1920
    %2011 = vmatprep.subr.mxu0 0.0
    %2012 = vmatpush2.msra.mxu0 %v1919
    %2013 = vmatprep.subr.mxu0 0.0
    %2014 = vmatpush2.msra.mxu0 %v1918
    %2015 = vmatprep.subr.mxu0 0.0
    %2016 = vmatpush2.msra.mxu0 %v1917
    %2017 = vmatprep.subr.mxu0 0.0
    %2018 = vmatpush2.msra.mxu0 %v1916
    %2019 = vmatprep.subr.mxu0 0.0
    %2020 = vmatpush2.msra.mxu0 %v1915
    %2021 = vmatprep.subr.mxu0 0.0
    %2022 = vmatpush2.msra.mxu0 %v1914
    %2023 = vmatprep.subr.mxu0 0.0
    %2024 = vmatpush2.msra.mxu0 %v1913
    %2025 = vmatprep.mubr.f32.mxu0 %v630
    %2026 = vmatmul.mubr.f32.gmra.mxu0 %v629
    %v2027 = vpop.f32.mrf.mxu0
    %v2028 = vadd.f32 0.0, %v2027
    %v2029 = vpop.f32.mrf.mxu0
    %2030 = vdwg.mxu0
    %2031 = vmatprep.subr.mxu0 0.0
    %2032 = vmatpush1.msra.mxu0 %v1944
    %2033 = vmatprep.subr.mxu0 0.0
    %2034 = vmatpush1.msra.mxu0 %v1943
    %2035 = vmatprep.subr.mxu0 0.0
    %2036 = vmatpush1.msra.mxu0 %v1942
    %2037 = vmatprep.subr.mxu0 0.0
    %2038 = vmatpush1.msra.mxu0 %v1941
    %2039 = vmatprep.subr.mxu0 0.0
    %2040 = vmatpush1.msra.mxu0 %v1940
    %2041 = vmatprep.subr.mxu0 0.0
    %2042 = vmatpush1.msra.mxu0 %v1939
    %2043 = vmatprep.subr.mxu0 0.0
    %2044 = vmatpush1.msra.mxu0 %v1938
    %2045 = vmatprep.subr.mxu0 0.0
    %2046 = vmatpush1.msra.mxu0 %v1937
    %2047 = vmatprep.subr.mxu0 0.0
    %2048 = vmatpush1.msra.mxu0 %v1936
    %2049 = vmatprep.subr.mxu0 0.0
    %2050 = vmatpush1.msra.mxu0 %v1935
    %2051 = vmatprep.subr.mxu0 0.0
    %2052 = vmatpush1.msra.mxu0 %v1934
    %2053 = vmatprep.subr.mxu0 0.0
    %2054 = vmatpush1.msra.mxu0 %v1933
    %2055 = vmatprep.subr.mxu0 0.0
    %2056 = vmatpush1.msra.mxu0 %v1932
    %2057 = vmatprep.subr.mxu0 0.0
    %2058 = vmatpush1.msra.mxu0 %v1931
    %2059 = vmatprep.subr.mxu0 0.0
    %2060 = vmatpush1.msra.mxu0 %v1930
    %2061 = vmatprep.subr.mxu0 0.0
    %2062 = vmatpush1.msra.mxu0 %v1929
    %2063 = vmatprep.subr.mxu0 0.0
    %2064 = vmatpush2.msra.mxu0 %v1960
    %2065 = vmatprep.subr.mxu0 0.0
    %2066 = vmatpush2.msra.mxu0 %v1959
    %2067 = vmatprep.subr.mxu0 0.0
    %2068 = vmatpush2.msra.mxu0 %v1958
    %2069 = vmatprep.subr.mxu0 0.0
    %2070 = vmatpush2.msra.mxu0 %v1957
    %2071 = vmatprep.subr.mxu0 0.0
    %2072 = vmatpush2.msra.mxu0 %v1956
    %2073 = vmatprep.subr.mxu0 0.0
    %2074 = vmatpush2.msra.mxu0 %v1955
    %2075 = vmatprep.subr.mxu0 0.0
    %2076 = vmatpush2.msra.mxu0 %v1954
    %2077 = vmatprep.subr.mxu0 0.0
    %2078 = vmatpush2.msra.mxu0 %v1953
    %2079 = vmatprep.subr.mxu0 0.0
    %2080 = vmatpush2.msra.mxu0 %v1952
    %2081 = vmatprep.subr.mxu0 0.0
    %2082 = vmatpush2.msra.mxu0 %v1951
    %2083 = vmatprep.subr.mxu0 0.0
    %2084 = vmatpush2.msra.mxu0 %v1950
    %2085 = vmatprep.subr.mxu0 0.0
    %2086 = vmatpush2.msra.mxu0 %v1949
    %2087 = vmatprep.subr.mxu0 0.0
    %2088 = vmatpush2.msra.mxu0 %v1948
    %2089 = vmatprep.subr.mxu0 0.0
    %2090 = vmatpush2.msra.mxu0 %v1947
    %2091 = vmatprep.subr.mxu0 0.0
    %2092 = vmatpush2.msra.mxu0 %v1946
    %2093 = vmatprep.subr.mxu0 0.0
    %2094 = vmatpush2.msra.mxu0 %v1945
    %2095 = vmatprep.mubr.f32.mxu0 %v632
    %2096 = vmatmul.mubr.f32.gmra.mxu0 %v631
    %v2097 = vpop.f32.mrf.mxu0
    %v2098 = vadd.f32 %v2028, %v2097
    %v2099 = vpop.f32.mrf.mxu0
    %2100 = vdwg.mxu0
    %s2101 = scalar_lea.vmem [#allocation2], 6
    %v2102 = vld [vmem:[%s2101] sm:$0x1]
    %v2103 = vlaneseq
    %v2104 = vshrl.u32 %v2103, 7
    %v2105 = vsub.s32 0, %v2104
    %v2106 = vrot.slane %v2102, %v2105
    %vm2107 = vcmp.eq.s32.totalorder %v42, %v2106
    %vm2108 = vcmp.eq.s32.totalorder %v43, %v2106
    %vm2109 = vcmp.eq.s32.totalorder %v44, %v2106
    %vm2110 = vcmp.eq.s32.totalorder %v45, %v2106
    %vm2111 = vcmp.eq.s32.totalorder %v46, %v2106
    %vm2112 = vcmp.eq.s32.totalorder %v47, %v2106
    %vm2113 = vcmp.eq.s32.totalorder %v48, %v2106
    %vm2114 = vcmp.eq.s32.totalorder %v49, %v2106
    %vm2115 = vcmp.eq.s32.totalorder %v50, %v2106
    %vm2116 = vcmp.eq.s32.totalorder %v51, %v2106
    %vm2117 = vcmp.eq.s32.totalorder %v52, %v2106
    %vm2118 = vcmp.eq.s32.totalorder %v53, %v2106
    %vm2119 = vcmp.eq.s32.totalorder %v54, %v2106
    %vm2120 = vcmp.eq.s32.totalorder %v55, %v2106
    %vm2121 = vcmp.eq.s32.totalorder %v56, %v2106
    %vm2122 = vcmp.eq.s32.totalorder %v57, %v2106
    %vm2123 = vcmp.eq.s32.totalorder %v58, %v2106
    %vm2124 = vcmp.eq.s32.totalorder %v59, %v2106
    %vm2125 = vcmp.eq.s32.totalorder %v60, %v2106
    %vm2126 = vcmp.eq.s32.totalorder %v61, %v2106
    %vm2127 = vcmp.eq.s32.totalorder %v62, %v2106
    %vm2128 = vcmp.eq.s32.totalorder %v63, %v2106
    %vm2129 = vcmp.eq.s32.totalorder %v64, %v2106
    %vm2130 = vcmp.eq.s32.totalorder %v65, %v2106
    %vm2131 = vcmp.eq.s32.totalorder %v66, %v2106
    %vm2132 = vcmp.eq.s32.totalorder %v67, %v2106
    %vm2133 = vcmp.eq.s32.totalorder %v68, %v2106
    %vm2134 = vcmp.eq.s32.totalorder %v69, %v2106
    %vm2135 = vcmp.eq.s32.totalorder %v70, %v2106
    %vm2136 = vcmp.eq.s32.totalorder %v71, %v2106
    %vm2137 = vcmp.eq.s32.totalorder %v72, %v2106
    %vm2138 = vcmp.eq.s32.totalorder %v73, %v2106
    %vm2139 = vcmp.eq.s32.totalorder %v74, %v2106
    %vm2140 = vcmp.eq.s32.totalorder %v75, %v2106
    %vm2141 = vcmp.eq.s32.totalorder %v76, %v2106
    %vm2142 = vcmp.eq.s32.totalorder %v77, %v2106
    %vm2143 = vcmp.eq.s32.totalorder %v78, %v2106
    %vm2144 = vcmp.eq.s32.totalorder %v79, %v2106
    %vm2145 = vcmp.eq.s32.totalorder %v80, %v2106
    %vm2146 = vcmp.eq.s32.totalorder %v81, %v2106
    %vm2147 = vcmp.eq.s32.totalorder %v82, %v2106
    %vm2148 = vcmp.eq.s32.totalorder %v83, %v2106
    %vm2149 = vcmp.eq.s32.totalorder %v84, %v2106
    %vm2150 = vcmp.eq.s32.totalorder %v85, %v2106
    %vm2151 = vcmp.eq.s32.totalorder %v86, %v2106
    %vm2152 = vcmp.eq.s32.totalorder %v87, %v2106
    %vm2153 = vcmp.eq.s32.totalorder %v88, %v2106
    %vm2154 = vcmp.eq.s32.totalorder %v89, %v2106
    %vm2155 = vcmp.eq.s32.totalorder %v90, %v2106
    %vm2156 = vcmp.eq.s32.totalorder %v91, %v2106
    %vm2157 = vcmp.eq.s32.totalorder %v92, %v2106
    %vm2158 = vcmp.eq.s32.totalorder %v93, %v2106
    %vm2159 = vcmp.eq.s32.totalorder %v94, %v2106
    %vm2160 = vcmp.eq.s32.totalorder %v95, %v2106
    %vm2161 = vcmp.eq.s32.totalorder %v96, %v2106
    %vm2162 = vcmp.eq.s32.totalorder %v97, %v2106
    %vm2163 = vcmp.eq.s32.totalorder %v98, %v2106
    %vm2164 = vcmp.eq.s32.totalorder %v99, %v2106
    %vm2165 = vcmp.eq.s32.totalorder %v100, %v2106
    %vm2166 = vcmp.eq.s32.totalorder %v101, %v2106
    %vm2167 = vcmp.eq.s32.totalorder %v102, %v2106
    %vm2168 = vcmp.eq.s32.totalorder %v103, %v2106
    %vm2169 = vcmp.eq.s32.totalorder %v104, %v2106
    %vm2170 = vcmp.eq.s32.totalorder %v105, %v2106
    %v2171 = vsel %vm2107, 1, 0
    %v2172 = vsel %vm2108, 1, 0
    %v2173 = vsel %vm2109, 1, 0
    %v2174 = vsel %vm2110, 1, 0
    %v2175 = vsel %vm2111, 1, 0
    %v2176 = vsel %vm2112, 1, 0
    %v2177 = vsel %vm2113, 1, 0
    %v2178 = vsel %vm2114, 1, 0
    %v2179 = vsel %vm2115, 1, 0
    %v2180 = vsel %vm2116, 1, 0
    %v2181 = vsel %vm2117, 1, 0
    %v2182 = vsel %vm2118, 1, 0
    %v2183 = vsel %vm2119, 1, 0
    %v2184 = vsel %vm2120, 1, 0
    %v2185 = vsel %vm2121, 1, 0
    %v2186 = vsel %vm2122, 1, 0
    %v2187 = vsel %vm2123, 1, 0
    %v2188 = vsel %vm2124, 1, 0
    %v2189 = vsel %vm2125, 1, 0
    %v2190 = vsel %vm2126, 1, 0
    %v2191 = vsel %vm2127, 1, 0
    %v2192 = vsel %vm2128, 1, 0
    %v2193 = vsel %vm2129, 1, 0
    %v2194 = vsel %vm2130, 1, 0
    %v2195 = vsel %vm2131, 1, 0
    %v2196 = vsel %vm2132, 1, 0
    %v2197 = vsel %vm2133, 1, 0
    %v2198 = vsel %vm2134, 1, 0
    %v2199 = vsel %vm2135, 1, 0
    %v2200 = vsel %vm2136, 1, 0
    %v2201 = vsel %vm2137, 1, 0
    %v2202 = vsel %vm2138, 1, 0
    %v2203 = vsel %vm2139, 1, 0
    %v2204 = vsel %vm2140, 1, 0
    %v2205 = vsel %vm2141, 1, 0
    %v2206 = vsel %vm2142, 1, 0
    %v2207 = vsel %vm2143, 1, 0
    %v2208 = vsel %vm2144, 1, 0
    %v2209 = vsel %vm2145, 1, 0
    %v2210 = vsel %vm2146, 1, 0
    %v2211 = vsel %vm2147, 1, 0
    %v2212 = vsel %vm2148, 1, 0
    %v2213 = vsel %vm2149, 1, 0
    %v2214 = vsel %vm2150, 1, 0
    %v2215 = vsel %vm2151, 1, 0
    %v2216 = vsel %vm2152, 1, 0
    %v2217 = vsel %vm2153, 1, 0
    %v2218 = vsel %vm2154, 1, 0
    %v2219 = vsel %vm2155, 1, 0
    %v2220 = vsel %vm2156, 1, 0
    %v2221 = vsel %vm2157, 1, 0
    %v2222 = vsel %vm2158, 1, 0
    %v2223 = vsel %vm2159, 1, 0
    %v2224 = vsel %vm2160, 1, 0
    %v2225 = vsel %vm2161, 1, 0
    %v2226 = vsel %vm2162, 1, 0
    %v2227 = vsel %vm2163, 1, 0
    %v2228 = vsel %vm2164, 1, 0
    %v2229 = vsel %vm2165, 1, 0
    %v2230 = vsel %vm2166, 1, 0
    %v2231 = vsel %vm2167, 1, 0
    %v2232 = vsel %vm2168, 1, 0
    %v2233 = vsel %vm2169, 1, 0
    %v2234 = vsel %vm2170, 1, 0
    %v2235 = vcvt.s32.f32 %v2171
    %v2236 = vcvt.s32.f32 %v2172
    %v2237 = vcvt.s32.f32 %v2173
    %v2238 = vcvt.s32.f32 %v2174
    %v2239 = vcvt.s32.f32 %v2175
    %v2240 = vcvt.s32.f32 %v2176
    %v2241 = vcvt.s32.f32 %v2177
    %v2242 = vcvt.s32.f32 %v2178
    %v2243 = vcvt.s32.f32 %v2179
    %v2244 = vcvt.s32.f32 %v2180
    %v2245 = vcvt.s32.f32 %v2181
    %v2246 = vcvt.s32.f32 %v2182
    %v2247 = vcvt.s32.f32 %v2183
    %v2248 = vcvt.s32.f32 %v2184
    %v2249 = vcvt.s32.f32 %v2185
    %v2250 = vcvt.s32.f32 %v2186
    %v2251 = vcvt.s32.f32 %v2187
    %v2252 = vcvt.s32.f32 %v2188
    %v2253 = vcvt.s32.f32 %v2189
    %v2254 = vcvt.s32.f32 %v2190
    %v2255 = vcvt.s32.f32 %v2191
    %v2256 = vcvt.s32.f32 %v2192
    %v2257 = vcvt.s32.f32 %v2193
    %v2258 = vcvt.s32.f32 %v2194
    %v2259 = vcvt.s32.f32 %v2195
    %v2260 = vcvt.s32.f32 %v2196
    %v2261 = vcvt.s32.f32 %v2197
    %v2262 = vcvt.s32.f32 %v2198
    %v2263 = vcvt.s32.f32 %v2199
    %v2264 = vcvt.s32.f32 %v2200
    %v2265 = vcvt.s32.f32 %v2201
    %v2266 = vcvt.s32.f32 %v2202
    %v2267 = vcvt.s32.f32 %v2203
    %v2268 = vcvt.s32.f32 %v2204
    %v2269 = vcvt.s32.f32 %v2205
    %v2270 = vcvt.s32.f32 %v2206
    %v2271 = vcvt.s32.f32 %v2207
    %v2272 = vcvt.s32.f32 %v2208
    %v2273 = vcvt.s32.f32 %v2209
    %v2274 = vcvt.s32.f32 %v2210
    %v2275 = vcvt.s32.f32 %v2211
    %v2276 = vcvt.s32.f32 %v2212
    %v2277 = vcvt.s32.f32 %v2213
    %v2278 = vcvt.s32.f32 %v2214
    %v2279 = vcvt.s32.f32 %v2215
    %v2280 = vcvt.s32.f32 %v2216
    %v2281 = vcvt.s32.f32 %v2217
    %v2282 = vcvt.s32.f32 %v2218
    %v2283 = vcvt.s32.f32 %v2219
    %v2284 = vcvt.s32.f32 %v2220
    %v2285 = vcvt.s32.f32 %v2221
    %v2286 = vcvt.s32.f32 %v2222
    %v2287 = vcvt.s32.f32 %v2223
    %v2288 = vcvt.s32.f32 %v2224
    %v2289 = vcvt.s32.f32 %v2225
    %v2290 = vcvt.s32.f32 %v2226
    %v2291 = vcvt.s32.f32 %v2227
    %v2292 = vcvt.s32.f32 %v2228
    %v2293 = vcvt.s32.f32 %v2229
    %v2294 = vcvt.s32.f32 %v2230
    %v2295 = vcvt.s32.f32 %v2231
    %v2296 = vcvt.s32.f32 %v2232
    %v2297 = vcvt.s32.f32 %v2233
    %v2298 = vcvt.s32.f32 %v2234
    %v2299 = vadd.f32 %v2235, 0.0
    %v2300 = vadd.f32 %v2236, 0.0
    %v2301 = vadd.f32 %v2237, 0.0
    %v2302 = vadd.f32 %v2238, 0.0
    %v2303 = vadd.f32 %v2239, 0.0
    %v2304 = vadd.f32 %v2240, 0.0
    %v2305 = vadd.f32 %v2241, 0.0
    %v2306 = vadd.f32 %v2242, 0.0
    %v2307 = vadd.f32 %v2243, 0.0
    %v2308 = vadd.f32 %v2244, 0.0
    %v2309 = vadd.f32 %v2245, 0.0
    %v2310 = vadd.f32 %v2246, 0.0
    %v2311 = vadd.f32 %v2247, 0.0
    %v2312 = vadd.f32 %v2248, 0.0
    %v2313 = vadd.f32 %v2249, 0.0
    %v2314 = vadd.f32 %v2250, 0.0
    %v2315 = vadd.f32 %v2251, 0.0
    %v2316 = vadd.f32 %v2252, 0.0
    %v2317 = vadd.f32 %v2253, 0.0
    %v2318 = vadd.f32 %v2254, 0.0
    %v2319 = vadd.f32 %v2255, 0.0
    %v2320 = vadd.f32 %v2256, 0.0
    %v2321 = vadd.f32 %v2257, 0.0
    %v2322 = vadd.f32 %v2258, 0.0
    %v2323 = vadd.f32 %v2259, 0.0
    %v2324 = vadd.f32 %v2260, 0.0
    %v2325 = vadd.f32 %v2261, 0.0
    %v2326 = vadd.f32 %v2262, 0.0
    %v2327 = vadd.f32 %v2263, 0.0
    %v2328 = vadd.f32 %v2264, 0.0
    %v2329 = vadd.f32 %v2265, 0.0
    %v2330 = vadd.f32 %v2266, 0.0
    %v2331 = vadd.f32 %v2267, 0.0
    %v2332 = vadd.f32 %v2268, 0.0
    %v2333 = vadd.f32 %v2269, 0.0
    %v2334 = vadd.f32 %v2270, 0.0
    %v2335 = vadd.f32 %v2271, 0.0
    %v2336 = vadd.f32 %v2272, 0.0
    %v2337 = vadd.f32 %v2273, 0.0
    %v2338 = vadd.f32 %v2274, 0.0
    %v2339 = vadd.f32 %v2275, 0.0
    %v2340 = vadd.f32 %v2276, 0.0
    %v2341 = vadd.f32 %v2277, 0.0
    %v2342 = vadd.f32 %v2278, 0.0
    %v2343 = vadd.f32 %v2279, 0.0
    %v2344 = vadd.f32 %v2280, 0.0
    %v2345 = vadd.f32 %v2281, 0.0
    %v2346 = vadd.f32 %v2282, 0.0
    %v2347 = vadd.f32 %v2283, 0.0
    %v2348 = vadd.f32 %v2284, 0.0
    %v2349 = vadd.f32 %v2285, 0.0
    %v2350 = vadd.f32 %v2286, 0.0
    %v2351 = vadd.f32 %v2287, 0.0
    %v2352 = vadd.f32 %v2288, 0.0
    %v2353 = vadd.f32 %v2289, 0.0
    %v2354 = vadd.f32 %v2290, 0.0
    %v2355 = vadd.f32 %v2291, 0.0
    %v2356 = vadd.f32 %v2292, 0.0
    %v2357 = vadd.f32 %v2293, 0.0
    %v2358 = vadd.f32 %v2294, 0.0
    %v2359 = vadd.f32 %v2295, 0.0
    %v2360 = vadd.f32 %v2296, 0.0
    %v2361 = vadd.f32 %v2297, 0.0
    %v2362 = vadd.f32 %v2298, 0.0
    %v2363 = vld [vmem:[%s2101 + $0x1] sm:$0x1]
    %v2364 = vadd.s32 %v2363, 256
    %v2365 = vlaneseq
    %v2366 = vshrl.u32 %v2365, 7
    %v2367 = vsub.s32 0, %v2366
    %v2368 = vrot.slane %v2364, %v2367
    %vm2369 = vcmp.eq.s32.totalorder %v42, %v2368
    %vm2370 = vcmp.eq.s32.totalorder %v43, %v2368
    %vm2371 = vcmp.eq.s32.totalorder %v44, %v2368
    %vm2372 = vcmp.eq.s32.totalorder %v45, %v2368
    %vm2373 = vcmp.eq.s32.totalorder %v46, %v2368
    %vm2374 = vcmp.eq.s32.totalorder %v47, %v2368
    %vm2375 = vcmp.eq.s32.totalorder %v48, %v2368
    %vm2376 = vcmp.eq.s32.totalorder %v49, %v2368
    %vm2377 = vcmp.eq.s32.totalorder %v50, %v2368
    %vm2378 = vcmp.eq.s32.totalorder %v51, %v2368
    %vm2379 = vcmp.eq.s32.totalorder %v52, %v2368
    %vm2380 = vcmp.eq.s32.totalorder %v53, %v2368
    %vm2381 = vcmp.eq.s32.totalorder %v54, %v2368
    %vm2382 = vcmp.eq.s32.totalorder %v55, %v2368
    %vm2383 = vcmp.eq.s32.totalorder %v56, %v2368
    %vm2384 = vcmp.eq.s32.totalorder %v57, %v2368
    %vm2385 = vcmp.eq.s32.totalorder %v58, %v2368
    %vm2386 = vcmp.eq.s32.totalorder %v59, %v2368
    %vm2387 = vcmp.eq.s32.totalorder %v60, %v2368
    %vm2388 = vcmp.eq.s32.totalorder %v61, %v2368
    %vm2389 = vcmp.eq.s32.totalorder %v62, %v2368
    %vm2390 = vcmp.eq.s32.totalorder %v63, %v2368
    %vm2391 = vcmp.eq.s32.totalorder %v64, %v2368
    %vm2392 = vcmp.eq.s32.totalorder %v65, %v2368
    %vm2393 = vcmp.eq.s32.totalorder %v66, %v2368
    %vm2394 = vcmp.eq.s32.totalorder %v67, %v2368
    %vm2395 = vcmp.eq.s32.totalorder %v68, %v2368
    %vm2396 = vcmp.eq.s32.totalorder %v69, %v2368
    %vm2397 = vcmp.eq.s32.totalorder %v70, %v2368
    %vm2398 = vcmp.eq.s32.totalorder %v71, %v2368
    %vm2399 = vcmp.eq.s32.totalorder %v72, %v2368
    %vm2400 = vcmp.eq.s32.totalorder %v73, %v2368
    %vm2401 = vcmp.eq.s32.totalorder %v74, %v2368
    %vm2402 = vcmp.eq.s32.totalorder %v75, %v2368
    %vm2403 = vcmp.eq.s32.totalorder %v76, %v2368
    %vm2404 = vcmp.eq.s32.totalorder %v77, %v2368
    %vm2405 = vcmp.eq.s32.totalorder %v78, %v2368
    %vm2406 = vcmp.eq.s32.totalorder %v79, %v2368
    %vm2407 = vcmp.eq.s32.totalorder %v80, %v2368
    %vm2408 = vcmp.eq.s32.totalorder %v81, %v2368
    %vm2409 = vcmp.eq.s32.totalorder %v82, %v2368
    %vm2410 = vcmp.eq.s32.totalorder %v83, %v2368
    %vm2411 = vcmp.eq.s32.totalorder %v84, %v2368
    %vm2412 = vcmp.eq.s32.totalorder %v85, %v2368
    %vm2413 = vcmp.eq.s32.totalorder %v86, %v2368
    %vm2414 = vcmp.eq.s32.totalorder %v87, %v2368
    %vm2415 = vcmp.eq.s32.totalorder %v88, %v2368
    %vm2416 = vcmp.eq.s32.totalorder %v89, %v2368
    %vm2417 = vcmp.eq.s32.totalorder %v90, %v2368
    %vm2418 = vcmp.eq.s32.totalorder %v91, %v2368
    %vm2419 = vcmp.eq.s32.totalorder %v92, %v2368
    %vm2420 = vcmp.eq.s32.totalorder %v93, %v2368
    %vm2421 = vcmp.eq.s32.totalorder %v94, %v2368
    %vm2422 = vcmp.eq.s32.totalorder %v95, %v2368
    %vm2423 = vcmp.eq.s32.totalorder %v96, %v2368
    %vm2424 = vcmp.eq.s32.totalorder %v97, %v2368
    %vm2425 = vcmp.eq.s32.totalorder %v98, %v2368
    %vm2426 = vcmp.eq.s32.totalorder %v99, %v2368
    %vm2427 = vcmp.eq.s32.totalorder %v100, %v2368
    %vm2428 = vcmp.eq.s32.totalorder %v101, %v2368
    %vm2429 = vcmp.eq.s32.totalorder %v102, %v2368
    %vm2430 = vcmp.eq.s32.totalorder %v103, %v2368
    %vm2431 = vcmp.eq.s32.totalorder %v104, %v2368
    %vm2432 = vcmp.eq.s32.totalorder %v105, %v2368
    %v2433 = vsel %vm2369, 1, 0
    %v2434 = vsel %vm2370, 1, 0
    %v2435 = vsel %vm2371, 1, 0
    %v2436 = vsel %vm2372, 1, 0
    %v2437 = vsel %vm2373, 1, 0
    %v2438 = vsel %vm2374, 1, 0
    %v2439 = vsel %vm2375, 1, 0
    %v2440 = vsel %vm2376, 1, 0
    %v2441 = vsel %vm2377, 1, 0
    %v2442 = vsel %vm2378, 1, 0
    %v2443 = vsel %vm2379, 1, 0
    %v2444 = vsel %vm2380, 1, 0
    %v2445 = vsel %vm2381, 1, 0
    %v2446 = vsel %vm2382, 1, 0
    %v2447 = vsel %vm2383, 1, 0
    %v2448 = vsel %vm2384, 1, 0
    %v2449 = vsel %vm2385, 1, 0
    %v2450 = vsel %vm2386, 1, 0
    %v2451 = vsel %vm2387, 1, 0
    %v2452 = vsel %vm2388, 1, 0
    %v2453 = vsel %vm2389, 1, 0
    %v2454 = vsel %vm2390, 1, 0
    %v2455 = vsel %vm2391, 1, 0
    %v2456 = vsel %vm2392, 1, 0
    %v2457 = vsel %vm2393, 1, 0
    %v2458 = vsel %vm2394, 1, 0
    %v2459 = vsel %vm2395, 1, 0
    %v2460 = vsel %vm2396, 1, 0
    %v2461 = vsel %vm2397, 1, 0
    %v2462 = vsel %vm2398, 1, 0
    %v2463 = vsel %vm2399, 1, 0
    %v2464 = vsel %vm2400, 1, 0
    %v2465 = vsel %vm2401, 1, 0
    %v2466 = vsel %vm2402, 1, 0
    %v2467 = vsel %vm2403, 1, 0
    %v2468 = vsel %vm2404, 1, 0
    %v2469 = vsel %vm2405, 1, 0
    %v2470 = vsel %vm2406, 1, 0
    %v2471 = vsel %vm2407, 1, 0
    %v2472 = vsel %vm2408, 1, 0
    %v2473 = vsel %vm2409, 1, 0
    %v2474 = vsel %vm2410, 1, 0
    %v2475 = vsel %vm2411, 1, 0
    %v2476 = vsel %vm2412, 1, 0
    %v2477 = vsel %vm2413, 1, 0
    %v2478 = vsel %vm2414, 1, 0
    %v2479 = vsel %vm2415, 1, 0
    %v2480 = vsel %vm2416, 1, 0
    %v2481 = vsel %vm2417, 1, 0
    %v2482 = vsel %vm2418, 1, 0
    %v2483 = vsel %vm2419, 1, 0
    %v2484 = vsel %vm2420, 1, 0
    %v2485 = vsel %vm2421, 1, 0
    %v2486 = vsel %vm2422, 1, 0
    %v2487 = vsel %vm2423, 1, 0
    %v2488 = vsel %vm2424, 1, 0
    %v2489 = vsel %vm2425, 1, 0
    %v2490 = vsel %vm2426, 1, 0
    %v2491 = vsel %vm2427, 1, 0
    %v2492 = vsel %vm2428, 1, 0
    %v2493 = vsel %vm2429, 1, 0
    %v2494 = vsel %vm2430, 1, 0
    %v2495 = vsel %vm2431, 1, 0
    %v2496 = vsel %vm2432, 1, 0
    %v2497 = vcvt.s32.f32 %v2433
    %v2498 = vcvt.s32.f32 %v2434
    %v2499 = vcvt.s32.f32 %v2435
    %v2500 = vcvt.s32.f32 %v2436
    %v2501 = vcvt.s32.f32 %v2437
    %v2502 = vcvt.s32.f32 %v2438
    %v2503 = vcvt.s32.f32 %v2439
    %v2504 = vcvt.s32.f32 %v2440
    %v2505 = vcvt.s32.f32 %v2441
    %v2506 = vcvt.s32.f32 %v2442
    %v2507 = vcvt.s32.f32 %v2443
    %v2508 = vcvt.s32.f32 %v2444
    %v2509 = vcvt.s32.f32 %v2445
    %v2510 = vcvt.s32.f32 %v2446
    %v2511 = vcvt.s32.f32 %v2447
    %v2512 = vcvt.s32.f32 %v2448
    %v2513 = vcvt.s32.f32 %v2449
    %v2514 = vcvt.s32.f32 %v2450
    %v2515 = vcvt.s32.f32 %v2451
    %v2516 = vcvt.s32.f32 %v2452
    %v2517 = vcvt.s32.f32 %v2453
    %v2518 = vcvt.s32.f32 %v2454
    %v2519 = vcvt.s32.f32 %v2455
    %v2520 = vcvt.s32.f32 %v2456
    %v2521 = vcvt.s32.f32 %v2457
    %v2522 = vcvt.s32.f32 %v2458
    %v2523 = vcvt.s32.f32 %v2459
    %v2524 = vcvt.s32.f32 %v2460
    %v2525 = vcvt.s32.f32 %v2461
    %v2526 = vcvt.s32.f32 %v2462
    %v2527 = vcvt.s32.f32 %v2463
    %v2528 = vcvt.s32.f32 %v2464
    %v2529 = vcvt.s32.f32 %v2465
    %v2530 = vcvt.s32.f32 %v2466
    %v2531 = vcvt.s32.f32 %v2467
    %v2532 = vcvt.s32.f32 %v2468
    %v2533 = vcvt.s32.f32 %v2469
    %v2534 = vcvt.s32.f32 %v2470
    %v2535 = vcvt.s32.f32 %v2471
    %v2536 = vcvt.s32.f32 %v2472
    %v2537 = vcvt.s32.f32 %v2473
    %v2538 = vcvt.s32.f32 %v2474
    %v2539 = vcvt.s32.f32 %v2475
    %v2540 = vcvt.s32.f32 %v2476
    %v2541 = vcvt.s32.f32 %v2477
    %v2542 = vcvt.s32.f32 %v2478
    %v2543 = vcvt.s32.f32 %v2479
    %v2544 = vcvt.s32.f32 %v2480
    %v2545 = vcvt.s32.f32 %v2481
    %v2546 = vcvt.s32.f32 %v2482
    %v2547 = vcvt.s32.f32 %v2483
    %v2548 = vcvt.s32.f32 %v2484
    %v2549 = vcvt.s32.f32 %v2485
    %v2550 = vcvt.s32.f32 %v2486
    %v2551 = vcvt.s32.f32 %v2487
    %v2552 = vcvt.s32.f32 %v2488
    %v2553 = vcvt.s32.f32 %v2489
    %v2554 = vcvt.s32.f32 %v2490
    %v2555 = vcvt.s32.f32 %v2491
    %v2556 = vcvt.s32.f32 %v2492
    %v2557 = vcvt.s32.f32 %v2493
    %v2558 = vcvt.s32.f32 %v2494
    %v2559 = vcvt.s32.f32 %v2495
    %v2560 = vcvt.s32.f32 %v2496
    %v2561 = vadd.f32 %v2299, %v2497
    %v2562 = vadd.f32 %v2300, %v2498
    %v2563 = vadd.f32 %v2301, %v2499
    %v2564 = vadd.f32 %v2302, %v2500
    %v2565 = vadd.f32 %v2303, %v2501
    %v2566 = vadd.f32 %v2304, %v2502
    %v2567 = vadd.f32 %v2305, %v2503
    %v2568 = vadd.f32 %v2306, %v2504
    %v2569 = vadd.f32 %v2307, %v2505
    %v2570 = vadd.f32 %v2308, %v2506
    %v2571 = vadd.f32 %v2309, %v2507
    %v2572 = vadd.f32 %v2310, %v2508
    %v2573 = vadd.f32 %v2311, %v2509
    %v2574 = vadd.f32 %v2312, %v2510
    %v2575 = vadd.f32 %v2313, %v2511
    %v2576 = vadd.f32 %v2314, %v2512
    %v2577 = vadd.f32 %v2315, %v2513
    %v2578 = vadd.f32 %v2316, %v2514
    %v2579 = vadd.f32 %v2317, %v2515
    %v2580 = vadd.f32 %v2318, %v2516
    %v2581 = vadd.f32 %v2319, %v2517
    %v2582 = vadd.f32 %v2320, %v2518
    %v2583 = vadd.f32 %v2321, %v2519
    %v2584 = vadd.f32 %v2322, %v2520
    %v2585 = vadd.f32 %v2323, %v2521
    %v2586 = vadd.f32 %v2324, %v2522
    %v2587 = vadd.f32 %v2325, %v2523
    %v2588 = vadd.f32 %v2326, %v2524
    %v2589 = vadd.f32 %v2327, %v2525
    %v2590 = vadd.f32 %v2328, %v2526
    %v2591 = vadd.f32 %v2329, %v2527
    %v2592 = vadd.f32 %v2330, %v2528
    %v2593 = vadd.f32 %v2331, %v2529
    %v2594 = vadd.f32 %v2332, %v2530
    %v2595 = vadd.f32 %v2333, %v2531
    %v2596 = vadd.f32 %v2334, %v2532
    %v2597 = vadd.f32 %v2335, %v2533
    %v2598 = vadd.f32 %v2336, %v2534
    %v2599 = vadd.f32 %v2337, %v2535
    %v2600 = vadd.f32 %v2338, %v2536
    %v2601 = vadd.f32 %v2339, %v2537
    %v2602 = vadd.f32 %v2340, %v2538
    %v2603 = vadd.f32 %v2341, %v2539
    %v2604 = vadd.f32 %v2342, %v2540
    %v2605 = vadd.f32 %v2343, %v2541
    %v2606 = vadd.f32 %v2344, %v2542
    %v2607 = vadd.f32 %v2345, %v2543
    %v2608 = vadd.f32 %v2346, %v2544
    %v2609 = vadd.f32 %v2347, %v2545
    %v2610 = vadd.f32 %v2348, %v2546
    %v2611 = vadd.f32 %v2349, %v2547
    %v2612 = vadd.f32 %v2350, %v2548
    %v2613 = vadd.f32 %v2351, %v2549
    %v2614 = vadd.f32 %v2352, %v2550
    %v2615 = vadd.f32 %v2353, %v2551
    %v2616 = vadd.f32 %v2354, %v2552
    %v2617 = vadd.f32 %v2355, %v2553
    %v2618 = vadd.f32 %v2356, %v2554
    %v2619 = vadd.f32 %v2357, %v2555
    %v2620 = vadd.f32 %v2358, %v2556
    %v2621 = vadd.f32 %v2359, %v2557
    %v2622 = vadd.f32 %v2360, %v2558
    %v2623 = vadd.f32 %v2361, %v2559
    %v2624 = vadd.f32 %v2362, %v2560
    %2625 = vmatprep.subr.mxu0 0.0
    %2626 = vmatpush1.msra.mxu0 %v2576
    %2627 = vmatprep.subr.mxu0 0.0
    %2628 = vmatpush1.msra.mxu0 %v2575
    %2629 = vmatprep.subr.mxu0 0.0
    %2630 = vmatpush1.msra.mxu0 %v2574
    %2631 = vmatprep.subr.mxu0 0.0
    %2632 = vmatpush1.msra.mxu0 %v2573
    %2633 = vmatprep.subr.mxu0 0.0
    %2634 = vmatpush1.msra.mxu0 %v2572
    %2635 = vmatprep.subr.mxu0 0.0
    %2636 = vmatpush1.msra.mxu0 %v2571
    %2637 = vmatprep.subr.mxu0 0.0
    %2638 = vmatpush1.msra.mxu0 %v2570
    %2639 = vmatprep.subr.mxu0 0.0
    %2640 = vmatpush1.msra.mxu0 %v2569
    %2641 = vmatprep.subr.mxu0 0.0
    %2642 = vmatpush1.msra.mxu0 %v2568
    %2643 = vmatprep.subr.mxu0 0.0
    %2644 = vmatpush1.msra.mxu0 %v2567
    %2645 = vmatprep.subr.mxu0 0.0
    %2646 = vmatpush1.msra.mxu0 %v2566
    %2647 = vmatprep.subr.mxu0 0.0
    %2648 = vmatpush1.msra.mxu0 %v2565
    %2649 = vmatprep.subr.mxu0 0.0
    %2650 = vmatpush1.msra.mxu0 %v2564
    %2651 = vmatprep.subr.mxu0 0.0
    %2652 = vmatpush1.msra.mxu0 %v2563
    %2653 = vmatprep.subr.mxu0 0.0
    %2654 = vmatpush1.msra.mxu0 %v2562
    %2655 = vmatprep.subr.mxu0 0.0
    %2656 = vmatpush1.msra.mxu0 %v2561
    %2657 = vmatprep.subr.mxu0 0.0
    %2658 = vmatpush2.msra.mxu0 %v2592
    %2659 = vmatprep.subr.mxu0 0.0
    %2660 = vmatpush2.msra.mxu0 %v2591
    %2661 = vmatprep.subr.mxu0 0.0
    %2662 = vmatpush2.msra.mxu0 %v2590
    %2663 = vmatprep.subr.mxu0 0.0
    %2664 = vmatpush2.msra.mxu0 %v2589
    %2665 = vmatprep.subr.mxu0 0.0
    %2666 = vmatpush2.msra.mxu0 %v2588
    %2667 = vmatprep.subr.mxu0 0.0
    %2668 = vmatpush2.msra.mxu0 %v2587
    %2669 = vmatprep.subr.mxu0 0.0
    %2670 = vmatpush2.msra.mxu0 %v2586
    %2671 = vmatprep.subr.mxu0 0.0
    %2672 = vmatpush2.msra.mxu0 %v2585
    %2673 = vmatprep.subr.mxu0 0.0
    %2674 = vmatpush2.msra.mxu0 %v2584
    %2675 = vmatprep.subr.mxu0 0.0
    %2676 = vmatpush2.msra.mxu0 %v2583
    %2677 = vmatprep.subr.mxu0 0.0
    %2678 = vmatpush2.msra.mxu0 %v2582
    %2679 = vmatprep.subr.mxu0 0.0
    %2680 = vmatpush2.msra.mxu0 %v2581
    %2681 = vmatprep.subr.mxu0 0.0
    %2682 = vmatpush2.msra.mxu0 %v2580
    %2683 = vmatprep.subr.mxu0 0.0
    %2684 = vmatpush2.msra.mxu0 %v2579
    %2685 = vmatprep.subr.mxu0 0.0
    %2686 = vmatpush2.msra.mxu0 %v2578
    %2687 = vmatprep.subr.mxu0 0.0
    %2688 = vmatpush2.msra.mxu0 %v2577
    %2689 = vmatprep.mubr.f32.mxu0 %v630
    %2690 = vmatmul.mubr.f32.gmra.mxu0 %v629
    %v2691 = vpop.f32.mrf.mxu0
    %v2692 = vadd.f32 0.0, %v2691
    %v2693 = vpop.f32.mrf.mxu0
    %2694 = vdwg.mxu0
    %2695 = vmatprep.subr.mxu0 0.0
    %2696 = vmatpush1.msra.mxu0 %v2608
    %2697 = vmatprep.subr.mxu0 0.0
    %2698 = vmatpush1.msra.mxu0 %v2607
    %2699 = vmatprep.subr.mxu0 0.0
    %2700 = vmatpush1.msra.mxu0 %v2606
    %2701 = vmatprep.subr.mxu0 0.0
    %2702 = vmatpush1.msra.mxu0 %v2605
    %2703 = vmatprep.subr.mxu0 0.0
    %2704 = vmatpush1.msra.mxu0 %v2604
    %2705 = vmatprep.subr.mxu0 0.0
    %2706 = vmatpush1.msra.mxu0 %v2603
    %2707 = vmatprep.subr.mxu0 0.0
    %2708 = vmatpush1.msra.mxu0 %v2602
    %2709 = vmatprep.subr.mxu0 0.0
    %2710 = vmatpush1.msra.mxu0 %v2601
    %2711 = vmatprep.subr.mxu0 0.0
    %2712 = vmatpush1.msra.mxu0 %v2600
    %2713 = vmatprep.subr.mxu0 0.0
    %2714 = vmatpush1.msra.mxu0 %v2599
    %2715 = vmatprep.subr.mxu0 0.0
    %2716 = vmatpush1.msra.mxu0 %v2598
    %2717 = vmatprep.subr.mxu0 0.0
    %2718 = vmatpush1.msra.mxu0 %v2597
    %2719 = vmatprep.subr.mxu0 0.0
    %2720 = vmatpush1.msra.mxu0 %v2596
    %2721 = vmatprep.subr.mxu0 0.0
    %2722 = vmatpush1.msra.mxu0 %v2595
    %2723 = vmatprep.subr.mxu0 0.0
    %2724 = vmatpush1.msra.mxu0 %v2594
    %2725 = vmatprep.subr.mxu0 0.0
    %2726 = vmatpush1.msra.mxu0 %v2593
    %2727 = vmatprep.subr.mxu0 0.0
    %2728 = vmatpush2.msra.mxu0 %v2624
    %2729 = vmatprep.subr.mxu0 0.0
    %2730 = vmatpush2.msra.mxu0 %v2623
    %2731 = vmatprep.subr.mxu0 0.0
    %2732 = vmatpush2.msra.mxu0 %v2622
    %2733 = vmatprep.subr.mxu0 0.0
    %2734 = vmatpush2.msra.mxu0 %v2621
    %2735 = vmatprep.subr.mxu0 0.0
    %2736 = vmatpush2.msra.mxu0 %v2620
    %2737 = vmatprep.subr.mxu0 0.0
    %2738 = vmatpush2.msra.mxu0 %v2619
    %2739 = vmatprep.subr.mxu0 0.0
    %2740 = vmatpush2.msra.mxu0 %v2618
    %2741 = vmatprep.subr.mxu0 0.0
    %2742 = vmatpush2.msra.mxu0 %v2617
    %2743 = vmatprep.subr.mxu0 0.0
    %2744 = vmatpush2.msra.mxu0 %v2616
    %2745 = vmatprep.subr.mxu0 0.0
    %2746 = vmatpush2.msra.mxu0 %v2615
    %2747 = vmatprep.subr.mxu0 0.0
    %2748 = vmatpush2.msra.mxu0 %v2614
    %2749 = vmatprep.subr.mxu0 0.0
    %2750 = vmatpush2.msra.mxu0 %v2613
    %2751 = vmatprep.subr.mxu0 0.0
    %2752 = vmatpush2.msra.mxu0 %v2612
    %2753 = vmatprep.subr.mxu0 0.0
    %2754 = vmatpush2.msra.mxu0 %v2611
    %2755 = vmatprep.subr.mxu0 0.0
    %2756 = vmatpush2.msra.mxu0 %v2610
    %2757 = vmatprep.subr.mxu0 0.0
    %2758 = vmatpush2.msra.mxu0 %v2609
    %2759 = vmatprep.mubr.f32.mxu0 %v632
    %2760 = vmatmul.mubr.f32.gmra.mxu0 %v631
    %v2761 = vpop.f32.mrf.mxu0
    %v2762 = vadd.f32 %v2692, %v2761
    %v2763 = vpop.f32.mrf.mxu0
    %2764 = vdwg.mxu0
    %v2765 = vld [vmem:[%s2] sm:$0x1]
    %v2767 = vlaneseq
    %v2768 = vshrl.u32 %v2767, 7
    %v2769 = vsub.s32 0, %v2768
    %v2770 = vrot.slane %v2765, %v2769
    %v2772 = vmul.f32 %v770, %v2770
    %v2773 = vmul.f32 %v1434, %v2770
    %v2774 = vmul.f32 %v2098, %v2770
    %v2775 = vmul.f32 %v2762, %v2770
    %v2776 = vpack.c.bf16 %v2773, %v2772
    %v2777 = vpack.c.bf16 %v2775, %v2774
    %v2780 = vunpack.c.l.b16 %v2776
    %v2781 = vunpack.c.h.b16 %v2776
    %v2782 = vunpack.c.l.b16 %v2777
    %v2783 = vunpack.c.h.b16 %v2777
    %v2784 = vpack.c.b16 %v2780, %v2780
    %v2785 = vpack.c.b16 %v2781, %v2781
    %v2786 = vpack.c.b16 %v2782, %v2782
    %v2787 = vpack.c.b16 %v2783, %v2783
    %2792 = vst [vmem:[#allocation7] sm:$0xf] %v2784
    %2793 = vst [vmem:[#allocation7 + $0x4] sm:$0xf] %v2785
    %2794 = vst [vmem:[#allocation7 + $0x8] sm:$0xf] %v2786
    %2795 = vst [vmem:[#allocation7 + $0xc] sm:$0xf] %v2787
    // Predicated region
    $region22: #{tpu_custom_call.1} parent=1 // pred_check
      _
    $region23: #{tpu_custom_call.1} parent=1 // pred_check_branch
      %2797 = sbr.rel (0) target = $region25
    $region24: #{tpu_custom_call.1} parent=1 // pred_region
      %s2799 = ssub.s32 256, 256
      %2800 = vsyncadd [#allocation4], %s2799
      %s2801 = sshll.u32 [#allocation7], 4
      %s2802 = int_to_ptr.vmem [resolvable:$true] %s2801
      %2807 = dma.vmem_to_hbm [thread:$0]  %s2802, 256, %s3, [#allocation4], 64, 64, 4
    $region25: #{tpu_custom_call.1} parent=1 // pred_fallthru
      _
    // Predicated region
    $region26: #{tpu_custom_call.1} parent=1 // pred_check
      _
    $region27: #{tpu_custom_call.1} parent=1 // pred_check_branch
      %2809 = sbr.rel (0) target = $region29
    $region28: #{tpu_custom_call.1} parent=1 // pred_region
      %2810 = dma.done [#allocation4], 256
    $region29: #{tpu_custom_call.1} parent=1 // pred_fallthru
      _
    %2811 = vsyncpa [#allocation3], 1
    %2812 = vsyncpa [#allocation6], 1
    %2813 = vsyncpa [#allocation4], 1

</llo_original>
